<compile_context>
chip_gen: v6e
topology: v6e:2x2x1
jax: 0.10.0
libtpu: 0.0.40
codegen_flags: <defaults>
</compile_context>

<pallas_src>
import jax
import jax.numpy as jnp
from jax.experimental import pallas as pl
from jax.experimental.pallas import tpu as pltpu

# Shapes implied by the module (cfg.output_root_hm_shape == 64 in the original repo).
IN_FEAT = 2048
HIDDEN = 512
FUSED_HIDDEN = 2 * HIDDEN          # root hidden | hand hidden
ROOT_HM = 64
HAND_DIM = 2
OUT_PAD = 128                      # lane-dense padded width of each branch's logits


def posenet_kernel(x_ref, w1_ref, s1_ref, b1_ref, w2_ref, out_ref):
    """One grid step == one branch (0 = root_fc, 1 = hand_fc).

    x_ref : [B, 2048] f32        (shared by both branches)
    w1_ref: [2048, 512] int8     (this branch's first-layer weights, quantized)
    s1_ref: [1, 512] f32         (per-output-channel dequant scale)
    b1_ref: [1, 512] f32
    w2_ref: [512, 128] bf16      (this branch's second-layer weights, lane-padded)
    out_ref: [B, 128] f32        (this branch's logits slab; padded cols are exact zeros)
    """
    x = x_ref[...].astype(jnp.bfloat16)                          # [B, 2048]
    # int8 -> bf16 dequant on the VPU; the per-channel scale is folded in after the
    # matmul (scale factors out of the K reduction), so this is a plain cast.
    w1 = w1_ref[...].astype(jnp.bfloat16)                        # [2048, 512]
    h = jnp.dot(x, w1, preferred_element_type=jnp.float32)       # [B, 512] f32 acc
    h = jnp.maximum(h * s1_ref[...] + b1_ref[...], 0.0)          # dequant + bias + ReLU
    logits = jnp.dot(h.astype(jnp.bfloat16), w2_ref[...],
                     preferred_element_type=jnp.float32)         # [B, 128], lane-dense
    out_ref[...] = logits


def _epilogue(root_hm, hand_logits):
    """Exact soft-argmax-1d + sigmoid (matches the PyTorch module)."""
    p = jax.nn.softmax(root_hm, axis=1)
    idx = jnp.arange(ROOT_HM, dtype=jnp.float32)[None, :]
    root_depth = jnp.sum(p * idx, axis=1, keepdims=True)         # [B, 1]
    hand_type = jax.nn.sigmoid(hand_logits)                      # [B, 2]
    return root_depth, hand_type


@jax.jit
def posenet_forward(img_feat, packed):
    """img_feat: [B, 2048] f32.  packed: fused int8/bf16 weights + f32 scales/biases.

    Returns (root_depth [B, 1], hand_type [B, 2]), both f32.
    """
    B = img_feat.shape[0]

    grid_spec = pltpu.PrefetchScalarGridSpec(
        num_scalar_prefetch=0,
        grid=(2,),                                                    # branch axis
        in_specs=[
            pl.BlockSpec((B, IN_FEAT), lambda c: (0, 0)),             # x (shared)
            pl.BlockSpec((IN_FEAT, HIDDEN), lambda c: (0, c)),        # W1 branch slab (int8)
            pl.BlockSpec((1, HIDDEN), lambda c: (0, c)),              # dequant scale
            pl.BlockSpec((1, HIDDEN), lambda c: (0, c)),              # b1 branch slab
            pl.BlockSpec((HIDDEN, OUT_PAD), lambda c: (c, 0)),        # W2 branch slab (bf16)
        ],
        out_specs=pl.BlockSpec((None, B, OUT_PAD), lambda c: (c, 0, 0)),
    )

    logits2 = pl.pallas_call(
        posenet_kernel,
        out_shape=jax.ShapeDtypeStruct((2, B, OUT_PAD), jnp.float32),
        grid_spec=grid_spec,
        compiler_params=pltpu.CompilerParams(
            # Branch axis is truly independent (disjoint weights / outputs) -> on v7x
            # the two branches map onto the two TensorCores.
            dimension_semantics=("parallel",),
            vmem_limit_bytes=32 << 20,   # ~9 MiB actual worst-case footprint + headroom
        ),
    )(img_feat, packed["w1_i8"], packed["s1"], packed["b1"], packed["w2"])

    # Tiny epilogue in XLA: exact softmax / soft-argmax / sigmoid, second-layer bias.
    root_hm = logits2[0, :, :ROOT_HM] + packed["b2r"]                 # [B, 64]
    hand_logits = logits2[1, :, :HAND_DIM] + packed["b2h"]            # [B, 2]
    return _epilogue(root_hm, hand_logits)


def init_params(key):
    """Deterministic synthetic parameters, shapes from PoseNet.__init__ ([in, out] layout)."""
    ks = jax.random.split(key, 8)

    def w(k, shape):
        return (jax.random.normal(k, shape, jnp.float32) * 0.02).astype(jnp.float32)

    return {
        # root_fc: make_linear_layers([2048, 512, 64], relu_final=False)
        "w1r": w(ks[0], (IN_FEAT, HIDDEN)), "b1r": w(ks[1], (1, HIDDEN)),
        "w2r": w(ks[2], (HIDDEN, ROOT_HM)), "b2r": w(ks[3], (1, ROOT_HM)),
        # hand_fc: make_linear_layers([2048, 512, 2], relu_final=False)
        "w1h": w(ks[4], (IN_FEAT, HIDDEN)), "b1h": w(ks[5], (1, HIDDEN)),
        "w2h": w(ks[6], (HIDDEN, HAND_DIM)), "b2h": w(ks[7], (1, HAND_DIM)),
    }


def pack_params(p):
    """Fuse the two branches; W1 -> int8 + per-output-channel scale, W2 -> bf16.

    w1_i8: [2048, 1024] int8  = quantize([w1r | w1h])      (per-column symmetric)
    s1   : [1, 1024]    f32   dequant scale per output channel
    b1   : [1, 1024]    f32   = [b1r | b1h]
    w2   : [1024, 128]  bf16  row block c (c*512:(c+1)*512) holds branch c's second-layer
                              weights in the first 64 / 2 columns, zero-padded to 128 lanes.
    """
    w1 = jnp.concatenate([p["w1r"], p["w1h"]], axis=1)                 # [2048, 1024] f32
    s1 = jnp.maximum(jnp.max(jnp.abs(w1), axis=0, keepdims=True) / 127.0, 1e-8)
    w1_i8 = jnp.clip(jnp.round(w1 / s1), -127.0, 127.0).astype(jnp.int8)
    b1 = jnp.concatenate([p["b1r"], p["b1h"]], axis=1).astype(jnp.float32)

    w2 = jnp.zeros((FUSED_HIDDEN, OUT_PAD), jnp.float32)
    w2 = w2.at[:HIDDEN, :ROOT_HM].set(p["w2r"])
    w2 = w2.at[HIDDEN:, :HAND_DIM].set(p["w2h"])
    w2 = w2.astype(jnp.bfloat16)

    return {
        "w1_i8": w1_i8, "s1": s1.astype(jnp.float32), "b1": b1, "w2": w2,
        "b2r": p["b2r"].astype(jnp.float32), "b2h": p["b2h"].astype(jnp.float32),
    }


def posenet_ref_packed(img_feat, packed):
    """Pure-JAX reference using the exact same packed (int8/bf16) weights and casts."""
    x = img_feat.astype(jnp.bfloat16)
    w1 = packed["w1_i8"].astype(jnp.bfloat16)
    h = jnp.dot(x, w1, preferred_element_type=jnp.float32) * packed["s1"] + packed["b1"]
    h = jnp.maximum(h, 0.0)                                            # [B, 1024]

    hr = h[:, :HIDDEN].astype(jnp.bfloat16)
    hh = h[:, HIDDEN:].astype(jnp.bfloat16)
    root_hm = jnp.dot(hr, packed["w2"][:HIDDEN, :ROOT_HM],
                      preferred_element_type=jnp.float32) + packed["b2r"]
    hand_logits = jnp.dot(hh, packed["w2"][HIDDEN:, :HAND_DIM],
                          preferred_element_type=jnp.float32) + packed["b2h"]
    return _epilogue(root_hm, hand_logits)


def posenet_ref_f32(img_feat, p):
    """Pure f32 reference mirroring the PyTorch forward exactly (unfused, unquantized)."""
    h = jax.nn.relu(img_feat @ p["w1r"] + p["b1r"])
    hm = h @ p["w2r"] + p["b2r"]
    soft = jax.nn.softmax(hm, axis=1)
    coord = jnp.sum(soft * jnp.arange(ROOT_HM, dtype=jnp.float32)[None, :], axis=1)
    root_depth = coord.reshape(-1, 1)
    hh = jax.nn.relu(img_feat @ p["w1h"] + p["b1h"])
    hand_type = jax.nn.sigmoid(hh @ p["w2h"] + p["b2h"])
    return root_depth, hand_type


if __name__ == "__main__":
    key = jax.random.PRNGKey(0)
    k_x, k_p = jax.random.split(key)

    # Small batch; img_feat is the 2048-d GAP feature from the backbone.
    # (Raising B / keeping weights resident amortizes the weight DMA — call-site choice.)
    B = 8
    img_feat = jax.random.normal(k_x, (B, IN_FEAT), jnp.float32)
    params = init_params(k_p)
    packed = pack_params(params)

    root_depth, hand_type = posenet_forward(img_feat, packed)
    jax.block_until_ready((root_depth, hand_type))

    assert root_depth.shape == (B, 1) and hand_type.shape == (B, HAND_DIM)

    # Gating check: reference built from the identical packed int8/bf16 weights and the
    # identical (exact) epilogue — only the matmul implementation path differs.
    root_c, hand_c = posenet_ref_packed(img_feat, packed)
    assert jnp.allclose(root_depth, root_c, atol=5e-2), "root mismatch vs packed-consistent ref"
    assert jnp.allclose(hand_type, hand_c, atol=5e-3), "hand mismatch vs packed-consistent ref"

    # Loose sanity check vs. the full-f32 PyTorch-equivalent reference (int8/bf16 weight
    # storage introduces small, expected deviations).
    root_f, hand_f = posenet_ref_f32(img_feat, params)
    assert jnp.allclose(root_depth, root_f, atol=0.5), "root far from f32 reference"
    assert jnp.allclose(hand_type, hand_f, atol=5e-2), "hand far from f32 reference"

    print("KERNEL_OK")
</pallas_src>

<mosaic_0001>
module attributes {stable_mosaic.version = 11 : i64} {
  func.func @posenet_kernel(%arg0: i32, %arg1: memref<8x2048xf32, #tpu.memory_space<vmem>>, %arg2: memref<2048x512xi8, #tpu.memory_space<vmem>>, %arg3: memref<1x512xf32, #tpu.memory_space<vmem>>, %arg4: memref<1x512xf32, #tpu.memory_space<vmem>>, %arg5: memref<512x128xbf16, #tpu.memory_space<vmem>>, %arg6: memref<1x8x128xf32, #tpu.memory_space<vmem>>) attributes {dimension_semantics = [#tpu.dimension_semantics<parallel>], iteration_bounds = array<i64: 2>, scalar_prefetch = 0 : i64, scratch_operands = 0 : i64, tpu.core_type = #tpu.core_type<tc>, window_params = [{pipeline_mode = #tpu.pipeline_mode<synchronous>, transform_indices = @transform_0, window_bounds = array<i64: 8, 2048>}, {transform_indices = @transform_1, window_bounds = array<i64: 2048, 512>}, {transform_indices = @transform_2, window_bounds = array<i64: 1, 512>}, {transform_indices = @transform_3, window_bounds = array<i64: 1, 512>}, {transform_indices = @transform_4, window_bounds = array<i64: 512, 128>}, {transform_indices = @transform_5, window_bounds = array<i64: 1, 8, 128>}]} {
    %c0 = arith.constant 0 : index
    %c0_0 = arith.constant 0 : index
    %0 = vector.load %arg1[%c0, %c0_0] : memref<8x2048xf32, #tpu.memory_space<vmem>>, vector<8x2048xf32>
    %1 = arith.truncf %0 : vector<8x2048xf32> to vector<8x2048xbf16>
    %c0_1 = arith.constant 0 : index
    %c0_2 = arith.constant 0 : index
    %2 = vector.load %arg2[%c0_1, %c0_2] : memref<2048x512xi8, #tpu.memory_space<vmem>>, vector<2048x512xi8>
    %3 = arith.sitofp %2 : vector<2048x512xi8> to vector<2048x512xbf16>
    %cst = arith.constant dense<0.000000e+00> : vector<8x512xf32>
    %4 = tpu.matmul %1, %3, %cst {dimension_numbers = #tpu.dot_dimension_numbers<[1], [0], [0], [1], [0, 0, 1, 1], [], []>} : vector<8x2048xbf16>, vector<2048x512xbf16>, vector<8x512xf32> -> vector<8x512xf32>
    %c0_3 = arith.constant 0 : index
    %c0_4 = arith.constant 0 : index
    %5 = vector.load %arg3[%c0_3, %c0_4] : memref<1x512xf32, #tpu.memory_space<vmem>>, vector<1x512xf32>
    %6 = vector.broadcast %5 : vector<1x512xf32> to vector<8x512xf32>
    %7 = arith.mulf %4, %6 : vector<8x512xf32>
    %c0_5 = arith.constant 0 : index
    %c0_6 = arith.constant 0 : index
    %8 = vector.load %arg4[%c0_5, %c0_6] : memref<1x512xf32, #tpu.memory_space<vmem>>, vector<1x512xf32>
    %9 = vector.broadcast %8 : vector<1x512xf32> to vector<8x512xf32>
    %10 = arith.addf %7, %9 : vector<8x512xf32>
    %cst_7 = arith.constant 0.000000e+00 : f32
    %11 = vector.broadcast %cst_7 : f32 to vector<8x512xf32>
    %12 = arith.maximumf %10, %11 : vector<8x512xf32>
    %13 = arith.truncf %12 : vector<8x512xf32> to vector<8x512xbf16>
    %c0_8 = arith.constant 0 : index
    %c0_9 = arith.constant 0 : index
    %14 = vector.load %arg5[%c0_8, %c0_9] : memref<512x128xbf16, #tpu.memory_space<vmem>>, vector<512x128xbf16>
    %cst_10 = arith.constant dense<0.000000e+00> : vector<8x128xf32>
    %15 = tpu.matmul %13, %14, %cst_10 {dimension_numbers = #tpu.dot_dimension_numbers<[1], [0], [0], [1], [0, 0, 1, 1], [], []>} : vector<8x512xbf16>, vector<512x128xbf16>, vector<8x128xf32> -> vector<8x128xf32>
    %c0_11 = arith.constant 0 : index
    %c0_12 = arith.constant 0 : index
    %c0_13 = arith.constant 0 : index
    %16 = vector.load %arg6[%c0_11, %c0_12, %c0_13] : memref<1x8x128xf32, #tpu.memory_space<vmem>>, vector<1x8x128xf32>
    %17 = vector.shape_cast %16 : vector<1x8x128xf32> to vector<8x128xf32>
    %18 = vector.shape_cast %15 : vector<8x128xf32> to vector<1x8x128xf32>
    tpu.vector_store %arg6[%c0_11, %c0_12, %c0_13], %18 {strides = array<i32>} : memref<1x8x128xf32, #tpu.memory_space<vmem>>, vector<1x8x128xf32>,
    return
  }
  func.func @transform_0(%arg0: i32) -> (i32, i32) {
    %c0_i32 = arith.constant 0 : i32
    %c0_i32_0 = arith.constant 0 : i32
    %c0_i32_1 = arith.constant 0 : i32
    return %c0_i32, %c0_i32_0 : i32, i32
  }
  func.func @transform_1(%arg0: i32) -> (i32, i32) {
    %c0_i32 = arith.constant 0 : i32
    %c0_i32_0 = arith.constant 0 : i32
    return %c0_i32, %arg0 : i32, i32
  }
  func.func @transform_2(%arg0: i32) -> (i32, i32) {
    %c0_i32 = arith.constant 0 : i32
    %c0_i32_0 = arith.constant 0 : i32
    return %c0_i32, %arg0 : i32, i32
  }
  func.func @transform_3(%arg0: i32) -> (i32, i32) {
    %c0_i32 = arith.constant 0 : i32
    %c0_i32_0 = arith.constant 0 : i32
    return %c0_i32, %arg0 : i32, i32
  }
  func.func @transform_4(%arg0: i32) -> (i32, i32) {
    %c0_i32 = arith.constant 0 : i32
    %c0_i32_0 = arith.constant 0 : i32
    return %arg0, %c0_i32 : i32, i32
  }
  func.func @transform_5(%arg0: i32) -> (i32, i32, i32) {
    %c0_i32 = arith.constant 0 : i32
    %c0_i32_0 = arith.constant 0 : i32
    %c0_i32_1 = arith.constant 0 : i32
    return %arg0, %c0_i32, %c0_i32_0 : i32, i32, i32
  }
}

</mosaic_0001>

<llo_original>
// kernel: posenet_forward.1
$region0: #{posenet_forward.1}
  #allocation0 [shape = 'u32[]', space=smem, size = 0x4, offset = 0x4, fixed_abs, tag = 'smem constant byte address 0x4 - core index']
  #allocation1 [shape = 'u32[144,128]{1,0:T(1,128)}', space=vmem, size = 0x12000, scoped, tag = 'internal scratch']
  %s0 = inlined_call_operand.hbm [shape: f32[8,2048], index: 0, kind: input, shape index: {}]
  %s1 = inlined_call_operand.hbm [shape: s8[2048,1024], index: 1, kind: input, shape index: {}]
  %s2 = inlined_call_operand.hbm [shape: f32[1,1024], index: 2, kind: input, shape index: {}]
  %s3 = inlined_call_operand.hbm [shape: f32[1,1024], index: 3, kind: input, shape index: {}]
  %s4 = inlined_call_operand.hbm [shape: bf16[1024,128], index: 4, kind: input, shape index: {}]
  %s5 = inlined_call_operand.vmem [shape: f32[2,8,128], index: 5, kind: output, shape index: {}]
  %s6 = sld [smem:[#allocation0]]
  $region73: #{posenet_forward.1} parent=0
    _
  %s8 = ssub.s32 1, %s6
  %s9 = scalar_select 0, %s8, %s6
  $region1: #{posenet_forward.1} parent=0
    #allocation2 [shape = 'u8[65536]{0}', space=vmem, size = 0x10000, scoped, tag = 'input window, operand 0, single buffered']
    #allocation3 [shape = 's32[2]{0}', space=sflag, size = 0x8, scoped, tag = 'scoped memory for posenet_forward.1']
    #allocation4 [shape = 'u8[2097152]{0}', space=vmem, size = 0x200000, scoped, tag = 'input window, operand 1']
    #allocation5 [shape = 's32[2]{0}', space=sflag, size = 0x8, scoped, tag = 'scoped memory for posenet_forward.1']
    #allocation6 [shape = 'u8[4096]{0}', space=vmem, size = 0x1000, scoped, tag = 'input window, operand 2']
    #allocation7 [shape = 'u8[4096]{0}', space=vmem, size = 0x1000, scoped, tag = 'input window, operand 3']
    #allocation8 [shape = 's32[2]{0}', space=sflag, size = 0x8, scoped, tag = 'scoped memory for posenet_forward.1']
    #allocation9 [shape = 'u8[262144]{0}', space=vmem, size = 0x40000, scoped, tag = 'input window, operand 4']
    %10 = vsyncpa [#allocation3], 0
    %11 = vsyncpa [#allocation5], 0
    %s12 = scalar_lea.sflag [#allocation5], 1
    %13 = vsyncpa %s12, 0
    %14 = vsyncpa [#allocation8], 0
    %s15 = scalar_lea.sflag [#allocation8], 1
    %16 = vsyncpa %s15, 0
    loop: start=0, step=1, limit=4
    $region2: #{posenet_forward.1} parent=1 // loop_pre_header
      _
    $region3: #{posenet_forward.1} parent=1 // loop_header
      %s18 = sphi 0, %s22
      %p19 = scmp.ge.s32.totalorder %s18, 4
      %s26 = sphi 0, %s26
      %s28 = sphi 0, %s26
      %s29 = sphi 0, %s28
      %s43 = sphi 0, %s29
      %s49 = sphi 0, %s51
      %s52 = sphi 0, %s49
      %s53 = sphi 0, %s52
      %s69 = sphi 0, %s53
      %s75 = sphi 0, %s77
      %s78 = sphi 0, %s75
      %s79 = sphi 0, %s78
      %s95 = sphi 0, %s79
      %s101 = sphi 0, %s103
      %s104 = sphi 0, %s101
      %s105 = sphi 0, %s104
      %s121 = sphi 0, %s105
      %s127 = sphi 0, %s129
      %s130 = sphi 0, %s127
      %s131 = sphi 0, %s130
      %s147 = sphi 0, %s131
      %s153 = sphi 0, %s155
      %s156 = sphi 0, %s153
      %s157 = sphi 0, %s156
      %s173 = sphi 0, %s157
    $region4: #{posenet_forward.1} parent=1 // loop_header_branch
      %21 = sbr.rel (%p19) target = $region8
    $region5: #{posenet_forward.1} parent=1 // loop_body
      %s23 = ssub.s32 %s18, 1
      %s24 = ssub.s32 %s18, 2
      %s25 = sadd.s32 %s18, 1
      %s27 = sadd.s32 %s26, 1
      %p30 = scmp.eq.s32.totalorder %s18, 1
      %p31 = scmp.ne.s32.totalorder %s26, %s28
      %p32 = scmp.eq.s32.totalorder %s18, 0
      %p33 = por %p31, %p32
      %p34 = scmp.ne.s32.totalorder %s26, %s28
      %p35 = scmp.eq.s32.totalorder %s23, 1
      %p36 = por %p34, %p35
      %p37 = scmp.ne.s32.totalorder %s28, %s29
      %p38 = scmp.eq.s32.totalorder %s23, 0
      %p39 = por %p37, %p38
      %p40 = scmp.ne.s32.totalorder %s28, %s29
      %p41 = scmp.eq.s32.totalorder %s24, 1
      %p42 = por %p40, %p41
      %p44 = scmp.ne.s32.totalorder %s29, %s43
      %p45 = scmp.eq.s32.totalorder %s24, 0
      %p46 = por %p44, %p45
      %s47 = ssub.s32 %s18, %s25
      %p48 = scmp.eq.s32.totalorder %s47, 0
      %s50 = sadd.s32 %s49, 1
      %s51 = scalar_select %p48, %s49, %s50
      %p54 = pneg %p48
      %p55 = scmp.eq.s32.totalorder %s18, 1
      %p56 = por %p54, %p55
      %p57 = scmp.ne.s32.totalorder %s49, %s52
      %p58 = scmp.eq.s32.totalorder %s18, 0
      %p59 = por %p57, %p58
      %p60 = scmp.ne.s32.totalorder %s49, %s52
      %p61 = scmp.eq.s32.totalorder %s23, 1
      %p62 = por %p60, %p61
      %p63 = scmp.ne.s32.totalorder %s52, %s53
      %p64 = scmp.eq.s32.totalorder %s23, 0
      %p65 = por %p63, %p64
      %p66 = scmp.ne.s32.totalorder %s52, %s53
      %p67 = scmp.eq.s32.totalorder %s24, 1
      %p68 = por %p66, %p67
      %p70 = scmp.ne.s32.totalorder %s53, %s69
      %p71 = scmp.eq.s32.totalorder %s24, 0
      %p72 = por %p70, %p71
      %s73 = ssub.s32 %s18, %s25
      %p74 = scmp.eq.s32.totalorder %s73, 0
      %s76 = sadd.s32 %s75, 1
      %s77 = scalar_select %p74, %s75, %s76
      %p80 = pneg %p74
      %p81 = scmp.eq.s32.totalorder %s18, 1
      %p82 = por %p80, %p81
      %p83 = scmp.ne.s32.totalorder %s75, %s78
      %p84 = scmp.eq.s32.totalorder %s18, 0
      %p85 = por %p83, %p84
      %p86 = scmp.ne.s32.totalorder %s75, %s78
      %p87 = scmp.eq.s32.totalorder %s23, 1
      %p88 = por %p86, %p87
      %p89 = scmp.ne.s32.totalorder %s78, %s79
      %p90 = scmp.eq.s32.totalorder %s23, 0
      %p91 = por %p89, %p90
      %p92 = scmp.ne.s32.totalorder %s78, %s79
      %p93 = scmp.eq.s32.totalorder %s24, 1
      %p94 = por %p92, %p93
      %p96 = scmp.ne.s32.totalorder %s79, %s95
      %p97 = scmp.eq.s32.totalorder %s24, 0
      %p98 = por %p96, %p97
      %s99 = ssub.s32 %s18, %s25
      %p100 = scmp.eq.s32.totalorder %s99, 0
      %s102 = sadd.s32 %s101, 1
      %s103 = scalar_select %p100, %s101, %s102
      %p106 = pneg %p100
      %p107 = scmp.eq.s32.totalorder %s18, 1
      %p108 = por %p106, %p107
      %p109 = scmp.ne.s32.totalorder %s101, %s104
      %p110 = scmp.eq.s32.totalorder %s18, 0
      %p111 = por %p109, %p110
      %p112 = scmp.ne.s32.totalorder %s101, %s104
      %p113 = scmp.eq.s32.totalorder %s23, 1
      %p114 = por %p112, %p113
      %p115 = scmp.ne.s32.totalorder %s104, %s105
      %p116 = scmp.eq.s32.totalorder %s23, 0
      %p117 = por %p115, %p116
      %p118 = scmp.ne.s32.totalorder %s104, %s105
      %p119 = scmp.eq.s32.totalorder %s24, 1
      %p120 = por %p118, %p119
      %p122 = scmp.ne.s32.totalorder %s105, %s121
      %p123 = scmp.eq.s32.totalorder %s24, 0
      %p124 = por %p122, %p123
      %s125 = ssub.s32 %s18, %s25
      %p126 = scmp.eq.s32.totalorder %s125, 0
      %s128 = sadd.s32 %s127, 1
      %s129 = scalar_select %p126, %s127, %s128
      %p132 = pneg %p126
      %p133 = scmp.eq.s32.totalorder %s18, 1
      %p134 = por %p132, %p133
      %p135 = scmp.ne.s32.totalorder %s127, %s130
      %p136 = scmp.eq.s32.totalorder %s18, 0
      %p137 = por %p135, %p136
      %p138 = scmp.ne.s32.totalorder %s127, %s130
      %p139 = scmp.eq.s32.totalorder %s23, 1
      %p140 = por %p138, %p139
      %p141 = scmp.ne.s32.totalorder %s130, %s131
      %p142 = scmp.eq.s32.totalorder %s23, 0
      %p143 = por %p141, %p142
      %p144 = scmp.ne.s32.totalorder %s130, %s131
      %p145 = scmp.eq.s32.totalorder %s24, 1
      %p146 = por %p144, %p145
      %p148 = scmp.ne.s32.totalorder %s131, %s147
      %p149 = scmp.eq.s32.totalorder %s24, 0
      %p150 = por %p148, %p149
      %s151 = ssub.s32 %s18, %s25
      %p152 = scmp.eq.s32.totalorder %s151, 0
      %s154 = sadd.s32 %s153, 1
      %s155 = scalar_select %p152, %s153, %s154
      %p158 = pneg %p152
      %p159 = scmp.eq.s32.totalorder %s18, 1
      %p160 = por %p158, %p159
      %p161 = scmp.ne.s32.totalorder %s153, %s156
      %p162 = scmp.eq.s32.totalorder %s18, 0
      %p163 = por %p161, %p162
      %p164 = scmp.ne.s32.totalorder %s153, %s156
      %p165 = scmp.eq.s32.totalorder %s23, 1
      %p166 = por %p164, %p165
      %p167 = scmp.ne.s32.totalorder %s156, %s157
      %p168 = scmp.eq.s32.totalorder %s23, 0
      %p169 = por %p167, %p168
      %p170 = scmp.ne.s32.totalorder %s156, %s157
      %p171 = scmp.eq.s32.totalorder %s24, 1
      %p172 = por %p170, %p171
      %p174 = scmp.ne.s32.totalorder %s157, %s173
      %p175 = scmp.eq.s32.totalorder %s24, 0
      %p176 = por %p174, %p175
      %p177 = scmp.le.s32.totalorder 1, %s18
      %p178 = scmp.lt.s32.totalorder %s18, 3
      %p179 = pnand %p177, %p178
      %p180 = pneg %p179
      // Predicated region
      $region9: #{posenet_forward.1} parent=5 // pred_check
        _
      $region10: #{posenet_forward.1} parent=5 // pred_check_branch
        %182 = sbr.rel (%p179) target = $region12
      $region11: #{posenet_forward.1} parent=5 // pred_region
        %s183 = ssub.s32 %s18, 1
        // Predicated region
        $region13: #{posenet_forward.1} parent=11 // pred_check
          %p184 = pneg %p39
        $region14: #{posenet_forward.1} parent=11 // pred_check_branch
          %186 = sbr.rel (%p184) target = $region16
        $region15: #{posenet_forward.1} parent=11 // pred_region
          %s188 = ssub.s32 2048, 2048
          %189 = vsyncadd [#allocation3], %s188
          %s191 = sshll.u32 [#allocation2], 4
          %s192 = int_to_ptr.vmem [resolvable:$true] %s191
          %194 = dma.hbm_to_vmem [thread:$0]  %s0, 2048, %s192, [#allocation3]
        $region16: #{posenet_forward.1} parent=11 // pred_fallthru
          _
      $region12: #{posenet_forward.1} parent=5 // pred_fallthru
        _
      %p195 = scmp.lt.s32.totalorder %s18, 2
      // Predicated region
      $region17: #{posenet_forward.1} parent=5 // pred_check
        %p196 = pneg %p195
      $region18: #{posenet_forward.1} parent=5 // pred_check_branch
        %198 = sbr.rel (%p196) target = $region20
      $region19: #{posenet_forward.1} parent=5 // pred_region
        // Predicated region
        $region21: #{posenet_forward.1} parent=19 // pred_check
          %p199 = pneg %p59
        $region22: #{posenet_forward.1} parent=19 // pred_check_branch
          %201 = sbr.rel (%p199) target = $region24
        $region23: #{posenet_forward.1} parent=19 // pred_region
          %s202 = sand.u32 %s18, 1
          %s203 = scalar_lea.sflag [#allocation5], %s202
          %s204 = sand.u32 %s49, 1
          %s205 = smul.addr %s204, 2048
          %s206 = scalar_lea.vmem [#allocation4], %s205
          %s207 = smul.u32 4, %s18
          %s209 = ssub.s32 32768, 32768
          %210 = vsyncadd %s203, %s209
          %s211 = smul.addr %s207, 128
          %s212 = scalar_lea.hbm %s1, %s211
          %s213 = sshll.u32 %s206, 4
          %s214 = int_to_ptr.vmem [resolvable:$true] %s213
          %219 = dma.hbm_to_vmem [thread:$0]  %s212, 32768, %s214, %s203, 1024, 512, 32
        $region24: #{posenet_forward.1} parent=19 // pred_fallthru
          _
        // Predicated region
        $region25: #{posenet_forward.1} parent=19 // pred_check
          %p220 = pneg %p85
        $region26: #{posenet_forward.1} parent=19 // pred_check_branch
          %222 = sbr.rel (%p220) target = $region28
        $region27: #{posenet_forward.1} parent=19 // pred_region
          %s223 = sand.u32 %s18, 1
          %s224 = scalar_lea.sflag [#allocation5], %s223
          %s225 = sand.u32 %s75, 1
          %s226 = smul.addr %s225, 4
          %s227 = scalar_lea.vmem [#allocation6], %s226
          %s228 = smul.u32 4, %s18
          %s230 = ssub.s32 64, 64
          %231 = vsyncadd %s224, %s230
          %s232 = smul.addr %s228, 16
          %s233 = scalar_lea.hbm %s2, %s232
          %s235 = sshll.u32 %s227, 4
          %s236 = int_to_ptr.vmem [resolvable:$true] %s235
          %238 = dma.hbm_to_vmem [thread:$0]  %s233, 64, %s236, %s224
        $region28: #{posenet_forward.1} parent=19 // pred_fallthru
          _
        // Predicated region
        $region29: #{posenet_forward.1} parent=19 // pred_check
          %p239 = pneg %p111
        $region30: #{posenet_forward.1} parent=19 // pred_check_branch
          %241 = sbr.rel (%p239) target = $region32
        $region31: #{posenet_forward.1} parent=19 // pred_region
          %s242 = sand.u32 %s18, 1
          %s243 = scalar_lea.sflag [#allocation8], %s242
          %s244 = sand.u32 %s101, 1
          %s245 = smul.addr %s244, 4
          %s246 = scalar_lea.vmem [#allocation7], %s245
          %s247 = smul.u32 4, %s18
          %s249 = ssub.s32 64, 64
          %250 = vsyncadd %s243, %s249
          %s251 = smul.addr %s247, 16
          %s252 = scalar_lea.hbm %s3, %s251
          %s254 = sshll.u32 %s246, 4
          %s255 = int_to_ptr.vmem [resolvable:$true] %s254
          %257 = dma.hbm_to_vmem [thread:$0]  %s252, 64, %s255, %s243
        $region32: #{posenet_forward.1} parent=19 // pred_fallthru
          _
        // Predicated region
        $region33: #{posenet_forward.1} parent=19 // pred_check
          %p258 = pneg %p137
        $region34: #{posenet_forward.1} parent=19 // pred_check_branch
          %260 = sbr.rel (%p258) target = $region36
        $region35: #{posenet_forward.1} parent=19 // pred_region
          %s261 = sand.u32 %s18, 1
          %s262 = scalar_lea.sflag [#allocation8], %s261
          %s263 = sand.u32 %s127, 1
          %s264 = smul.addr %s263, 256
          %s265 = scalar_lea.vmem [#allocation9], %s264
          %s266 = smul.u32 64, %s18
          %s268 = ssub.s32 4096, 4096
          %269 = vsyncadd %s262, %s268
          %s270 = smul.addr %s266, 64
          %s271 = scalar_lea.hbm %s4, %s270
          %s272 = sshll.u32 %s265, 4
          %s273 = int_to_ptr.vmem [resolvable:$true] %s272
          %278 = dma.hbm_to_vmem [thread:$0]  %s271, 4096, %s273, %s262, 64, 64, 4
        $region36: #{posenet_forward.1} parent=19 // pred_fallthru
          _
      $region20: #{posenet_forward.1} parent=5 // pred_fallthru
        _
      %p279 = scmp.le.s32.totalorder 1, %s18
      %p280 = scmp.lt.s32.totalorder %s18, 3
      %p281 = pnand %p279, %p280
      %p282 = pneg %p281
      // Predicated region
      $region37: #{posenet_forward.1} parent=5 // pred_check
        _
      $region38: #{posenet_forward.1} parent=5 // pred_check_branch
        %284 = sbr.rel (%p281) target = $region40
      $region39: #{posenet_forward.1} parent=5 // pred_region
        %s285 = ssub.s32 %s18, 1
        // Predicated region
        $region41: #{posenet_forward.1} parent=39 // pred_check
          %p286 = pneg %p39
        $region42: #{posenet_forward.1} parent=39 // pred_check_branch
          %288 = sbr.rel (%p286) target = $region44
        $region43: #{posenet_forward.1} parent=39 // pred_region
          %289 = dma.done [#allocation3], 2048
        $region44: #{posenet_forward.1} parent=39 // pred_fallthru
          _
        %s290 = sand.u32 %s23, 1
        %s291 = scalar_lea.sflag [#allocation5], %s290
        %s292 = sand.u32 %s52, 1
        %s293 = smul.addr %s292, 2048
        %s294 = scalar_lea.vmem [#allocation4], %s293
        // Predicated region
        $region45: #{posenet_forward.1} parent=39 // pred_check
          %p295 = pneg %p65
        $region46: #{posenet_forward.1} parent=39 // pred_check_branch
          %297 = sbr.rel (%p295) target = $region48
        $region47: #{posenet_forward.1} parent=39 // pred_region
          %298 = dma.done %s291, 32768
        $region48: #{posenet_forward.1} parent=39 // pred_fallthru
          _
        %s299 = sand.u32 %s23, 1
        %s300 = scalar_lea.sflag [#allocation5], %s299
        %s301 = sand.u32 %s78, 1
        %s302 = smul.addr %s301, 4
        %s303 = scalar_lea.vmem [#allocation6], %s302
        // Predicated region
        $region49: #{posenet_forward.1} parent=39 // pred_check
          %p304 = pneg %p91
        $region50: #{posenet_forward.1} parent=39 // pred_check_branch
          %306 = sbr.rel (%p304) target = $region52
        $region51: #{posenet_forward.1} parent=39 // pred_region
          %307 = dma.done %s300, 64
        $region52: #{posenet_forward.1} parent=39 // pred_fallthru
          _
        %s308 = sand.u32 %s23, 1
        %s309 = scalar_lea.sflag [#allocation8], %s308
        %s310 = sand.u32 %s104, 1
        %s311 = smul.addr %s310, 4
        %s312 = scalar_lea.vmem [#allocation7], %s311
        // Predicated region
        $region53: #{posenet_forward.1} parent=39 // pred_check
          %p313 = pneg %p117
        $region54: #{posenet_forward.1} parent=39 // pred_check_branch
          %315 = sbr.rel (%p313) target = $region56
        $region55: #{posenet_forward.1} parent=39 // pred_region
          %316 = dma.done %s309, 64
        $region56: #{posenet_forward.1} parent=39 // pred_fallthru
          _
        %s317 = sand.u32 %s23, 1
        %s318 = scalar_lea.sflag [#allocation8], %s317
        %s319 = sand.u32 %s130, 1
        %s320 = smul.addr %s319, 256
        %s321 = scalar_lea.vmem [#allocation9], %s320
        // Predicated region
        $region57: #{posenet_forward.1} parent=39 // pred_check
          %p322 = pneg %p143
        $region58: #{posenet_forward.1} parent=39 // pred_check_branch
          %324 = sbr.rel (%p322) target = $region60
        $region59: #{posenet_forward.1} parent=39 // pred_region
          %325 = dma.done %s318, 4096
        $region60: #{posenet_forward.1} parent=39 // pred_fallthru
          _
        %p326 = pneg %p39
        %p327 = pneg %p36
        %s328 = sand.u32 %s23, 1
        %s329 = scalar_lea.sflag [#allocation5], %s328
        %s330 = sand.u32 %s52, 1
        %s331 = smul.addr %s330, 2048
        %s332 = scalar_lea.vmem [#allocation4], %s331
        %p333 = pneg %p65
        %p334 = pneg %p62
        %s335 = sand.u32 %s23, 1
        %s336 = scalar_lea.sflag [#allocation5], %s335
        %s337 = sand.u32 %s78, 1
        %s338 = smul.addr %s337, 4
        %s339 = scalar_lea.vmem [#allocation6], %s338
        %p340 = pneg %p91
        %p341 = pneg %p88
        %s342 = sand.u32 %s23, 1
        %s343 = scalar_lea.sflag [#allocation8], %s342
        %s344 = sand.u32 %s104, 1
        %s345 = smul.addr %s344, 4
        %s346 = scalar_lea.vmem [#allocation7], %s345
        %p347 = pneg %p117
        %p348 = pneg %p114
        %s349 = sand.u32 %s23, 1
        %s350 = scalar_lea.sflag [#allocation8], %s349
        %s351 = sand.u32 %s130, 1
        %s352 = smul.addr %s351, 256
        %s353 = scalar_lea.vmem [#allocation9], %s352
        %p354 = pneg %p143
        %p355 = pneg %p140
        %p356 = pneg %p169
        %p357 = pneg %p166
        %p358 = scmp.lt.s32.totalorder %s23, 1
        %s359 = scalar_select %p358, %s23, 1
        %s360 = smul.addr %s359, 8
        %s361 = scalar_lea.vmem %s5, %s360
        %s362 = smul.u32 4, %s23
        %s363 = smul.u32 4, %s23
        %s364 = smul.u32 4, %s23
        %s365 = smul.u32 64, %s23
        %p366 = scmp.lt.s32.totalorder %s23, 1
        %s367 = scalar_select %p366, %s23, 1
        %s368 = smul.addr %s367, 8
        %s369 = scalar_lea.vmem %s5, %s368
        %v371 = vld [vmem:[#allocation2] sm:$0xff]
        %v372 = vld [vmem:[#allocation2 + $0x8] sm:$0xff]
        %v373 = vld [vmem:[#allocation2 + $0x10] sm:$0xff]
        %v374 = vld [vmem:[#allocation2 + $0x18] sm:$0xff]
        %v375 = vld [vmem:[#allocation2 + $0x20] sm:$0xff]
        %v376 = vld [vmem:[#allocation2 + $0x28] sm:$0xff]
        %v377 = vld [vmem:[#allocation2 + $0x30] sm:$0xff]
        %v378 = vld [vmem:[#allocation2 + $0x38] sm:$0xff]
        %v379 = vld [vmem:[#allocation2 + $0x40] sm:$0xff]
        %v380 = vld [vmem:[#allocation2 + $0x48] sm:$0xff]
        %v381 = vld [vmem:[#allocation2 + $0x50] sm:$0xff]
        %v382 = vld [vmem:[#allocation2 + $0x58] sm:$0xff]
        %v383 = vld [vmem:[#allocation2 + $0x60] sm:$0xff]
        %v384 = vld [vmem:[#allocation2 + $0x68] sm:$0xff]
        %v385 = vld [vmem:[#allocation2 + $0x70] sm:$0xff]
        %v386 = vld [vmem:[#allocation2 + $0x78] sm:$0xff]
        %v387 = vpack.c.bf16 %v371, %v371
        %v388 = vpack.c.bf16 %v372, %v372
        %v389 = vpack.c.bf16 %v373, %v373
        %v390 = vpack.c.bf16 %v374, %v374
        %v391 = vpack.c.bf16 %v375, %v375
        %v392 = vpack.c.bf16 %v376, %v376
        %v393 = vpack.c.bf16 %v377, %v377
        %v394 = vpack.c.bf16 %v378, %v378
        %v395 = vpack.c.bf16 %v379, %v379
        %v396 = vpack.c.bf16 %v380, %v380
        %v397 = vpack.c.bf16 %v381, %v381
        %v398 = vpack.c.bf16 %v382, %v382
        %v399 = vpack.c.bf16 %v383, %v383
        %v400 = vpack.c.bf16 %v384, %v384
        %v401 = vpack.c.bf16 %v385, %v385
        %v402 = vpack.c.bf16 %v386, %v386
        %v403 = vld [vmem:[%s294] sm:$0xff]
        %v404 = vld [vmem:[%s294 + $0x8] sm:$0xff]
        %v405 = vld [vmem:[%s294 + $0x10] sm:$0xff]
        %v406 = vld [vmem:[%s294 + $0x18] sm:$0xff]
        %v407 = vld [vmem:[%s294 + $0x20] sm:$0xff]
        %v408 = vld [vmem:[%s294 + $0x28] sm:$0xff]
        %v409 = vld [vmem:[%s294 + $0x30] sm:$0xff]
        %v410 = vld [vmem:[%s294 + $0x38] sm:$0xff]
        %v411 = vld [vmem:[%s294 + $0x40] sm:$0xff]
        %v412 = vld [vmem:[%s294 + $0x48] sm:$0xff]
        %v413 = vld [vmem:[%s294 + $0x50] sm:$0xff]
        %v414 = vld [vmem:[%s294 + $0x58] sm:$0xff]
        %v415 = vld [vmem:[%s294 + $0x60] sm:$0xff]
        %v416 = vld [vmem:[%s294 + $0x68] sm:$0xff]
        %v417 = vld [vmem:[%s294 + $0x70] sm:$0xff]
        %v418 = vld [vmem:[%s294 + $0x78] sm:$0xff]
        %v419 = vld [vmem:[%s294 + $0x80] sm:$0xff]
        %v420 = vld [vmem:[%s294 + $0x88] sm:$0xff]
        %v421 = vld [vmem:[%s294 + $0x90] sm:$0xff]
        %v422 = vld [vmem:[%s294 + $0x98] sm:$0xff]
        %v423 = vld [vmem:[%s294 + $0xa0] sm:$0xff]
        %v424 = vld [vmem:[%s294 + $0xa8] sm:$0xff]
        %v425 = vld [vmem:[%s294 + $0xb0] sm:$0xff]
        %v426 = vld [vmem:[%s294 + $0xb8] sm:$0xff]
        %v427 = vld [vmem:[%s294 + $0xc0] sm:$0xff]
        %v428 = vld [vmem:[%s294 + $0xc8] sm:$0xff]
        %v429 = vld [vmem:[%s294 + $0xd0] sm:$0xff]
        %v430 = vld [vmem:[%s294 + $0xd8] sm:$0xff]
        %v431 = vld [vmem:[%s294 + $0xe0] sm:$0xff]
        %v432 = vld [vmem:[%s294 + $0xe8] sm:$0xff]
        %v433 = vld [vmem:[%s294 + $0xf0] sm:$0xff]
        %v434 = vld [vmem:[%s294 + $0xf8] sm:$0xff]
        %v435 = vld [vmem:[%s294 + $0x100] sm:$0xff]
        %v436 = vld [vmem:[%s294 + $0x108] sm:$0xff]
        %v437 = vld [vmem:[%s294 + $0x110] sm:$0xff]
        %v438 = vld [vmem:[%s294 + $0x118] sm:$0xff]
        %v439 = vld [vmem:[%s294 + $0x120] sm:$0xff]
        %v440 = vld [vmem:[%s294 + $0x128] sm:$0xff]
        %v441 = vld [vmem:[%s294 + $0x130] sm:$0xff]
        %v442 = vld [vmem:[%s294 + $0x138] sm:$0xff]
        %v443 = vld [vmem:[%s294 + $0x140] sm:$0xff]
        %v444 = vld [vmem:[%s294 + $0x148] sm:$0xff]
        %v445 = vld [vmem:[%s294 + $0x150] sm:$0xff]
        %v446 = vld [vmem:[%s294 + $0x158] sm:$0xff]
        %v447 = vld [vmem:[%s294 + $0x160] sm:$0xff]
        %v448 = vld [vmem:[%s294 + $0x168] sm:$0xff]
        %v449 = vld [vmem:[%s294 + $0x170] sm:$0xff]
        %v450 = vld [vmem:[%s294 + $0x178] sm:$0xff]
        %v451 = vld [vmem:[%s294 + $0x180] sm:$0xff]
        %v452 = vld [vmem:[%s294 + $0x188] sm:$0xff]
        %v453 = vld [vmem:[%s294 + $0x190] sm:$0xff]
        %v454 = vld [vmem:[%s294 + $0x198] sm:$0xff]
        %v455 = vld [vmem:[%s294 + $0x1a0] sm:$0xff]
        %v456 = vld [vmem:[%s294 + $0x1a8] sm:$0xff]
        %v457 = vld [vmem:[%s294 + $0x1b0] sm:$0xff]
        %v458 = vld [vmem:[%s294 + $0x1b8] sm:$0xff]
        %v459 = vld [vmem:[%s294 + $0x1c0] sm:$0xff]
        %v460 = vld [vmem:[%s294 + $0x1c8] sm:$0xff]
        %v461 = vld [vmem:[%s294 + $0x1d0] sm:$0xff]
        %v462 = vld [vmem:[%s294 + $0x1d8] sm:$0xff]
        %v463 = vld [vmem:[%s294 + $0x1e0] sm:$0xff]
        %v464 = vld [vmem:[%s294 + $0x1e8] sm:$0xff]
        %v465 = vld [vmem:[%s294 + $0x1f0] sm:$0xff]
        %v466 = vld [vmem:[%s294 + $0x1f8] sm:$0xff]
        %v467 = vld [vmem:[%s294 + $0x200] sm:$0xff]
        %v468 = vld [vmem:[%s294 + $0x208] sm:$0xff]
        %v469 = vld [vmem:[%s294 + $0x210] sm:$0xff]
        %v470 = vld [vmem:[%s294 + $0x218] sm:$0xff]
        %v471 = vld [vmem:[%s294 + $0x220] sm:$0xff]
        %v472 = vld [vmem:[%s294 + $0x228] sm:$0xff]
        %v473 = vld [vmem:[%s294 + $0x230] sm:$0xff]
        %v474 = vld [vmem:[%s294 + $0x238] sm:$0xff]
        %v475 = vld [vmem:[%s294 + $0x240] sm:$0xff]
        %v476 = vld [vmem:[%s294 + $0x248] sm:$0xff]
        %v477 = vld [vmem:[%s294 + $0x250] sm:$0xff]
        %v478 = vld [vmem:[%s294 + $0x258] sm:$0xff]
        %v479 = vld [vmem:[%s294 + $0x260] sm:$0xff]
        %v480 = vld [vmem:[%s294 + $0x268] sm:$0xff]
        %v481 = vld [vmem:[%s294 + $0x270] sm:$0xff]
        %v482 = vld [vmem:[%s294 + $0x278] sm:$0xff]
        %v483 = vld [vmem:[%s294 + $0x280] sm:$0xff]
        %v484 = vld [vmem:[%s294 + $0x288] sm:$0xff]
        %v485 = vld [vmem:[%s294 + $0x290] sm:$0xff]
        %v486 = vld [vmem:[%s294 + $0x298] sm:$0xff]
        %v487 = vld [vmem:[%s294 + $0x2a0] sm:$0xff]
        %v488 = vld [vmem:[%s294 + $0x2a8] sm:$0xff]
        %v489 = vld [vmem:[%s294 + $0x2b0] sm:$0xff]
        %v490 = vld [vmem:[%s294 + $0x2b8] sm:$0xff]
        %v491 = vld [vmem:[%s294 + $0x2c0] sm:$0xff]
        %v492 = vld [vmem:[%s294 + $0x2c8] sm:$0xff]
        %v493 = vld [vmem:[%s294 + $0x2d0] sm:$0xff]
        %v494 = vld [vmem:[%s294 + $0x2d8] sm:$0xff]
        %v495 = vld [vmem:[%s294 + $0x2e0] sm:$0xff]
        %v496 = vld [vmem:[%s294 + $0x2e8] sm:$0xff]
        %v497 = vld [vmem:[%s294 + $0x2f0] sm:$0xff]
        %v498 = vld [vmem:[%s294 + $0x2f8] sm:$0xff]
        %v499 = vld [vmem:[%s294 + $0x300] sm:$0xff]
        %v500 = vld [vmem:[%s294 + $0x308] sm:$0xff]
        %v501 = vld [vmem:[%s294 + $0x310] sm:$0xff]
        %v502 = vld [vmem:[%s294 + $0x318] sm:$0xff]
        %v503 = vld [vmem:[%s294 + $0x320] sm:$0xff]
        %v504 = vld [vmem:[%s294 + $0x328] sm:$0xff]
        %v505 = vld [vmem:[%s294 + $0x330] sm:$0xff]
        %v506 = vld [vmem:[%s294 + $0x338] sm:$0xff]
        %v507 = vld [vmem:[%s294 + $0x340] sm:$0xff]
        %v508 = vld [vmem:[%s294 + $0x348] sm:$0xff]
        %v509 = vld [vmem:[%s294 + $0x350] sm:$0xff]
        %v510 = vld [vmem:[%s294 + $0x358] sm:$0xff]
        %v511 = vld [vmem:[%s294 + $0x360] sm:$0xff]
        %v512 = vld [vmem:[%s294 + $0x368] sm:$0xff]
        %v513 = vld [vmem:[%s294 + $0x370] sm:$0xff]
        %v514 = vld [vmem:[%s294 + $0x378] sm:$0xff]
        %v515 = vld [vmem:[%s294 + $0x380] sm:$0xff]
        %v516 = vld [vmem:[%s294 + $0x388] sm:$0xff]
        %v517 = vld [vmem:[%s294 + $0x390] sm:$0xff]
        %v518 = vld [vmem:[%s294 + $0x398] sm:$0xff]
        %v519 = vld [vmem:[%s294 + $0x3a0] sm:$0xff]
        %v520 = vld [vmem:[%s294 + $0x3a8] sm:$0xff]
        %v521 = vld [vmem:[%s294 + $0x3b0] sm:$0xff]
        %v522 = vld [vmem:[%s294 + $0x3b8] sm:$0xff]
        %v523 = vld [vmem:[%s294 + $0x3c0] sm:$0xff]
        %v524 = vld [vmem:[%s294 + $0x3c8] sm:$0xff]
        %v525 = vld [vmem:[%s294 + $0x3d0] sm:$0xff]
        %v526 = vld [vmem:[%s294 + $0x3d8] sm:$0xff]
        %v527 = vld [vmem:[%s294 + $0x3e0] sm:$0xff]
        %v528 = vld [vmem:[%s294 + $0x3e8] sm:$0xff]
        %v529 = vld [vmem:[%s294 + $0x3f0] sm:$0xff]
        %v530 = vld [vmem:[%s294 + $0x3f8] sm:$0xff]
        %v531 = vld [vmem:[%s294 + $0x400] sm:$0xff]
        %v532 = vld [vmem:[%s294 + $0x408] sm:$0xff]
        %v533 = vld [vmem:[%s294 + $0x410] sm:$0xff]
        %v534 = vld [vmem:[%s294 + $0x418] sm:$0xff]
        %v535 = vld [vmem:[%s294 + $0x420] sm:$0xff]
        %v536 = vld [vmem:[%s294 + $0x428] sm:$0xff]
        %v537 = vld [vmem:[%s294 + $0x430] sm:$0xff]
        %v538 = vld [vmem:[%s294 + $0x438] sm:$0xff]
        %v539 = vld [vmem:[%s294 + $0x440] sm:$0xff]
        %v540 = vld [vmem:[%s294 + $0x448] sm:$0xff]
        %v541 = vld [vmem:[%s294 + $0x450] sm:$0xff]
        %v542 = vld [vmem:[%s294 + $0x458] sm:$0xff]
        %v543 = vld [vmem:[%s294 + $0x460] sm:$0xff]
        %v544 = vld [vmem:[%s294 + $0x468] sm:$0xff]
        %v545 = vld [vmem:[%s294 + $0x470] sm:$0xff]
        %v546 = vld [vmem:[%s294 + $0x478] sm:$0xff]
        %v547 = vld [vmem:[%s294 + $0x480] sm:$0xff]
        %v548 = vld [vmem:[%s294 + $0x488] sm:$0xff]
        %v549 = vld [vmem:[%s294 + $0x490] sm:$0xff]
        %v550 = vld [vmem:[%s294 + $0x498] sm:$0xff]
        %v551 = vld [vmem:[%s294 + $0x4a0] sm:$0xff]
        %v552 = vld [vmem:[%s294 + $0x4a8] sm:$0xff]
        %v553 = vld [vmem:[%s294 + $0x4b0] sm:$0xff]
        %v554 = vld [vmem:[%s294 + $0x4b8] sm:$0xff]
        %v555 = vld [vmem:[%s294 + $0x4c0] sm:$0xff]
        %v556 = vld [vmem:[%s294 + $0x4c8] sm:$0xff]
        %v557 = vld [vmem:[%s294 + $0x4d0] sm:$0xff]
        %v558 = vld [vmem:[%s294 + $0x4d8] sm:$0xff]
        %v559 = vld [vmem:[%s294 + $0x4e0] sm:$0xff]
        %v560 = vld [vmem:[%s294 + $0x4e8] sm:$0xff]
        %v561 = vld [vmem:[%s294 + $0x4f0] sm:$0xff]
        %v562 = vld [vmem:[%s294 + $0x4f8] sm:$0xff]
        %v563 = vld [vmem:[%s294 + $0x500] sm:$0xff]
        %v564 = vld [vmem:[%s294 + $0x508] sm:$0xff]
        %v565 = vld [vmem:[%s294 + $0x510] sm:$0xff]
        %v566 = vld [vmem:[%s294 + $0x518] sm:$0xff]
        %v567 = vld [vmem:[%s294 + $0x520] sm:$0xff]
        %v568 = vld [vmem:[%s294 + $0x528] sm:$0xff]
        %v569 = vld [vmem:[%s294 + $0x530] sm:$0xff]
        %v570 = vld [vmem:[%s294 + $0x538] sm:$0xff]
        %v571 = vld [vmem:[%s294 + $0x540] sm:$0xff]
        %v572 = vld [vmem:[%s294 + $0x548] sm:$0xff]
        %v573 = vld [vmem:[%s294 + $0x550] sm:$0xff]
        %v574 = vld [vmem:[%s294 + $0x558] sm:$0xff]
        %v575 = vld [vmem:[%s294 + $0x560] sm:$0xff]
        %v576 = vld [vmem:[%s294 + $0x568] sm:$0xff]
        %v577 = vld [vmem:[%s294 + $0x570] sm:$0xff]
        %v578 = vld [vmem:[%s294 + $0x578] sm:$0xff]
        %v579 = vld [vmem:[%s294 + $0x580] sm:$0xff]
        %v580 = vld [vmem:[%s294 + $0x588] sm:$0xff]
        %v581 = vld [vmem:[%s294 + $0x590] sm:$0xff]
        %v582 = vld [vmem:[%s294 + $0x598] sm:$0xff]
        %v583 = vld [vmem:[%s294 + $0x5a0] sm:$0xff]
        %v584 = vld [vmem:[%s294 + $0x5a8] sm:$0xff]
        %v585 = vld [vmem:[%s294 + $0x5b0] sm:$0xff]
        %v586 = vld [vmem:[%s294 + $0x5b8] sm:$0xff]
        %v587 = vld [vmem:[%s294 + $0x5c0] sm:$0xff]
        %v588 = vld [vmem:[%s294 + $0x5c8] sm:$0xff]
        %v589 = vld [vmem:[%s294 + $0x5d0] sm:$0xff]
        %v590 = vld [vmem:[%s294 + $0x5d8] sm:$0xff]
        %v591 = vld [vmem:[%s294 + $0x5e0] sm:$0xff]
        %v592 = vld [vmem:[%s294 + $0x5e8] sm:$0xff]
        %v593 = vld [vmem:[%s294 + $0x5f0] sm:$0xff]
        %v594 = vld [vmem:[%s294 + $0x5f8] sm:$0xff]
        %v595 = vld [vmem:[%s294 + $0x600] sm:$0xff]
        %v596 = vld [vmem:[%s294 + $0x608] sm:$0xff]
        %v597 = vld [vmem:[%s294 + $0x610] sm:$0xff]
        %v598 = vld [vmem:[%s294 + $0x618] sm:$0xff]
        %v599 = vld [vmem:[%s294 + $0x620] sm:$0xff]
        %v600 = vld [vmem:[%s294 + $0x628] sm:$0xff]
        %v601 = vld [vmem:[%s294 + $0x630] sm:$0xff]
        %v602 = vld [vmem:[%s294 + $0x638] sm:$0xff]
        %v603 = vld [vmem:[%s294 + $0x640] sm:$0xff]
        %v604 = vld [vmem:[%s294 + $0x648] sm:$0xff]
        %v605 = vld [vmem:[%s294 + $0x650] sm:$0xff]
        %v606 = vld [vmem:[%s294 + $0x658] sm:$0xff]
        %v607 = vld [vmem:[%s294 + $0x660] sm:$0xff]
        %v608 = vld [vmem:[%s294 + $0x668] sm:$0xff]
        %v609 = vld [vmem:[%s294 + $0x670] sm:$0xff]
        %v610 = vld [vmem:[%s294 + $0x678] sm:$0xff]
        %v611 = vld [vmem:[%s294 + $0x680] sm:$0xff]
        %v612 = vld [vmem:[%s294 + $0x688] sm:$0xff]
        %v613 = vld [vmem:[%s294 + $0x690] sm:$0xff]
        %v614 = vld [vmem:[%s294 + $0x698] sm:$0xff]
        %v615 = vld [vmem:[%s294 + $0x6a0] sm:$0xff]
        %v616 = vld [vmem:[%s294 + $0x6a8] sm:$0xff]
        %v617 = vld [vmem:[%s294 + $0x6b0] sm:$0xff]
        %v618 = vld [vmem:[%s294 + $0x6b8] sm:$0xff]
        %v619 = vld [vmem:[%s294 + $0x6c0] sm:$0xff]
        %v620 = vld [vmem:[%s294 + $0x6c8] sm:$0xff]
        %v621 = vld [vmem:[%s294 + $0x6d0] sm:$0xff]
        %v622 = vld [vmem:[%s294 + $0x6d8] sm:$0xff]
        %v623 = vld [vmem:[%s294 + $0x6e0] sm:$0xff]
        %v624 = vld [vmem:[%s294 + $0x6e8] sm:$0xff]
        %v625 = vld [vmem:[%s294 + $0x6f0] sm:$0xff]
        %v626 = vld [vmem:[%s294 + $0x6f8] sm:$0xff]
        %v627 = vld [vmem:[%s294 + $0x700] sm:$0xff]
        %v628 = vld [vmem:[%s294 + $0x708] sm:$0xff]
        %v629 = vld [vmem:[%s294 + $0x710] sm:$0xff]
        %v630 = vld [vmem:[%s294 + $0x718] sm:$0xff]
        %v631 = vld [vmem:[%s294 + $0x720] sm:$0xff]
        %v632 = vld [vmem:[%s294 + $0x728] sm:$0xff]
        %v633 = vld [vmem:[%s294 + $0x730] sm:$0xff]
        %v634 = vld [vmem:[%s294 + $0x738] sm:$0xff]
        %v635 = vld [vmem:[%s294 + $0x740] sm:$0xff]
        %v636 = vld [vmem:[%s294 + $0x748] sm:$0xff]
        %v637 = vld [vmem:[%s294 + $0x750] sm:$0xff]
        %v638 = vld [vmem:[%s294 + $0x758] sm:$0xff]
        %v639 = vld [vmem:[%s294 + $0x760] sm:$0xff]
        %v640 = vld [vmem:[%s294 + $0x768] sm:$0xff]
        %v641 = vld [vmem:[%s294 + $0x770] sm:$0xff]
        %v642 = vld [vmem:[%s294 + $0x778] sm:$0xff]
        %v643 = vld [vmem:[%s294 + $0x780] sm:$0xff]
        %v644 = vld [vmem:[%s294 + $0x788] sm:$0xff]
        %v645 = vld [vmem:[%s294 + $0x790] sm:$0xff]
        %v646 = vld [vmem:[%s294 + $0x798] sm:$0xff]
        %v647 = vld [vmem:[%s294 + $0x7a0] sm:$0xff]
        %v648 = vld [vmem:[%s294 + $0x7a8] sm:$0xff]
        %v649 = vld [vmem:[%s294 + $0x7b0] sm:$0xff]
        %v650 = vld [vmem:[%s294 + $0x7b8] sm:$0xff]
        %v651 = vld [vmem:[%s294 + $0x7c0] sm:$0xff]
        %v652 = vld [vmem:[%s294 + $0x7c8] sm:$0xff]
        %v653 = vld [vmem:[%s294 + $0x7d0] sm:$0xff]
        %v654 = vld [vmem:[%s294 + $0x7d8] sm:$0xff]
        %v655 = vld [vmem:[%s294 + $0x7e0] sm:$0xff]
        %v656 = vld [vmem:[%s294 + $0x7e8] sm:$0xff]
        %v657 = vld [vmem:[%s294 + $0x7f0] sm:$0xff]
        %v658 = vld [vmem:[%s294 + $0x7f8] sm:$0xff]
        %v659 = vunpack.c.l.s8.bf16 %v403
        %v660 = vunpack.c.l.s8.bf16 %v404
        %v661 = vunpack.c.l.s8.bf16 %v405
        %v662 = vunpack.c.l.s8.bf16 %v406
        %v663 = vunpack.c.h.s8.bf16 %v403
        %v664 = vunpack.c.h.s8.bf16 %v404
        %v665 = vunpack.c.h.s8.bf16 %v405
        %v666 = vunpack.c.h.s8.bf16 %v406
        %v667 = vunpack.c.l.s8.bf16 %v407
        %v668 = vunpack.c.l.s8.bf16 %v408
        %v669 = vunpack.c.l.s8.bf16 %v409
        %v670 = vunpack.c.l.s8.bf16 %v410
        %v671 = vunpack.c.h.s8.bf16 %v407
        %v672 = vunpack.c.h.s8.bf16 %v408
        %v673 = vunpack.c.h.s8.bf16 %v409
        %v674 = vunpack.c.h.s8.bf16 %v410
        %v675 = vunpack.c.l.s8.bf16 %v411
        %v676 = vunpack.c.l.s8.bf16 %v412
        %v677 = vunpack.c.l.s8.bf16 %v413
        %v678 = vunpack.c.l.s8.bf16 %v414
        %v679 = vunpack.c.h.s8.bf16 %v411
        %v680 = vunpack.c.h.s8.bf16 %v412
        %v681 = vunpack.c.h.s8.bf16 %v413
        %v682 = vunpack.c.h.s8.bf16 %v414
        %v683 = vunpack.c.l.s8.bf16 %v415
        %v684 = vunpack.c.l.s8.bf16 %v416
        %v685 = vunpack.c.l.s8.bf16 %v417
        %v686 = vunpack.c.l.s8.bf16 %v418
        %v687 = vunpack.c.h.s8.bf16 %v415
        %v688 = vunpack.c.h.s8.bf16 %v416
        %v689 = vunpack.c.h.s8.bf16 %v417
        %v690 = vunpack.c.h.s8.bf16 %v418
        %v691 = vunpack.c.l.s8.bf16 %v419
        %v692 = vunpack.c.l.s8.bf16 %v420
        %v693 = vunpack.c.l.s8.bf16 %v421
        %v694 = vunpack.c.l.s8.bf16 %v422
        %v695 = vunpack.c.h.s8.bf16 %v419
        %v696 = vunpack.c.h.s8.bf16 %v420
        %v697 = vunpack.c.h.s8.bf16 %v421
        %v698 = vunpack.c.h.s8.bf16 %v422
        %v699 = vunpack.c.l.s8.bf16 %v423
        %v700 = vunpack.c.l.s8.bf16 %v424
        %v701 = vunpack.c.l.s8.bf16 %v425
        %v702 = vunpack.c.l.s8.bf16 %v426
        %v703 = vunpack.c.h.s8.bf16 %v423
        %v704 = vunpack.c.h.s8.bf16 %v424
        %v705 = vunpack.c.h.s8.bf16 %v425
        %v706 = vunpack.c.h.s8.bf16 %v426
        %v707 = vunpack.c.l.s8.bf16 %v427
        %v708 = vunpack.c.l.s8.bf16 %v428
        %v709 = vunpack.c.l.s8.bf16 %v429
        %v710 = vunpack.c.l.s8.bf16 %v430
        %v711 = vunpack.c.h.s8.bf16 %v427
        %v712 = vunpack.c.h.s8.bf16 %v428
        %v713 = vunpack.c.h.s8.bf16 %v429
        %v714 = vunpack.c.h.s8.bf16 %v430
        %v715 = vunpack.c.l.s8.bf16 %v431
        %v716 = vunpack.c.l.s8.bf16 %v432
        %v717 = vunpack.c.l.s8.bf16 %v433
        %v718 = vunpack.c.l.s8.bf16 %v434
        %v719 = vunpack.c.h.s8.bf16 %v431
        %v720 = vunpack.c.h.s8.bf16 %v432
        %v721 = vunpack.c.h.s8.bf16 %v433
        %v722 = vunpack.c.h.s8.bf16 %v434
        %v723 = vunpack.c.l.s8.bf16 %v435
        %v724 = vunpack.c.l.s8.bf16 %v436
        %v725 = vunpack.c.l.s8.bf16 %v437
        %v726 = vunpack.c.l.s8.bf16 %v438
        %v727 = vunpack.c.h.s8.bf16 %v435
        %v728 = vunpack.c.h.s8.bf16 %v436
        %v729 = vunpack.c.h.s8.bf16 %v437
        %v730 = vunpack.c.h.s8.bf16 %v438
        %v731 = vunpack.c.l.s8.bf16 %v439
        %v732 = vunpack.c.l.s8.bf16 %v440
        %v733 = vunpack.c.l.s8.bf16 %v441
        %v734 = vunpack.c.l.s8.bf16 %v442
        %v735 = vunpack.c.h.s8.bf16 %v439
        %v736 = vunpack.c.h.s8.bf16 %v440
        %v737 = vunpack.c.h.s8.bf16 %v441
        %v738 = vunpack.c.h.s8.bf16 %v442
        %v739 = vunpack.c.l.s8.bf16 %v443
        %v740 = vunpack.c.l.s8.bf16 %v444
        %v741 = vunpack.c.l.s8.bf16 %v445
        %v742 = vunpack.c.l.s8.bf16 %v446
        %v743 = vunpack.c.h.s8.bf16 %v443
        %v744 = vunpack.c.h.s8.bf16 %v444
        %v745 = vunpack.c.h.s8.bf16 %v445
        %v746 = vunpack.c.h.s8.bf16 %v446
        %v747 = vunpack.c.l.s8.bf16 %v447
        %v748 = vunpack.c.l.s8.bf16 %v448
        %v749 = vunpack.c.l.s8.bf16 %v449
        %v750 = vunpack.c.l.s8.bf16 %v450
        %v751 = vunpack.c.h.s8.bf16 %v447
        %v752 = vunpack.c.h.s8.bf16 %v448
        %v753 = vunpack.c.h.s8.bf16 %v449
        %v754 = vunpack.c.h.s8.bf16 %v450
        %v755 = vunpack.c.l.s8.bf16 %v451
        %v756 = vunpack.c.l.s8.bf16 %v452
        %v757 = vunpack.c.l.s8.bf16 %v453
        %v758 = vunpack.c.l.s8.bf16 %v454
        %v759 = vunpack.c.h.s8.bf16 %v451
        %v760 = vunpack.c.h.s8.bf16 %v452
        %v761 = vunpack.c.h.s8.bf16 %v453
        %v762 = vunpack.c.h.s8.bf16 %v454
        %v763 = vunpack.c.l.s8.bf16 %v455
        %v764 = vunpack.c.l.s8.bf16 %v456
        %v765 = vunpack.c.l.s8.bf16 %v457
        %v766 = vunpack.c.l.s8.bf16 %v458
        %v767 = vunpack.c.h.s8.bf16 %v455
        %v768 = vunpack.c.h.s8.bf16 %v456
        %v769 = vunpack.c.h.s8.bf16 %v457
        %v770 = vunpack.c.h.s8.bf16 %v458
        %v771 = vunpack.c.l.s8.bf16 %v459
        %v772 = vunpack.c.l.s8.bf16 %v460
        %v773 = vunpack.c.l.s8.bf16 %v461
        %v774 = vunpack.c.l.s8.bf16 %v462
        %v775 = vunpack.c.h.s8.bf16 %v459
        %v776 = vunpack.c.h.s8.bf16 %v460
        %v777 = vunpack.c.h.s8.bf16 %v461
        %v778 = vunpack.c.h.s8.bf16 %v462
        %v779 = vunpack.c.l.s8.bf16 %v463
        %v780 = vunpack.c.l.s8.bf16 %v464
        %v781 = vunpack.c.l.s8.bf16 %v465
        %v782 = vunpack.c.l.s8.bf16 %v466
        %v783 = vunpack.c.h.s8.bf16 %v463
        %v784 = vunpack.c.h.s8.bf16 %v464
        %v785 = vunpack.c.h.s8.bf16 %v465
        %v786 = vunpack.c.h.s8.bf16 %v466
        %v787 = vunpack.c.l.s8.bf16 %v467
        %v788 = vunpack.c.l.s8.bf16 %v468
        %v789 = vunpack.c.l.s8.bf16 %v469
        %v790 = vunpack.c.l.s8.bf16 %v470
        %v791 = vunpack.c.h.s8.bf16 %v467
        %v792 = vunpack.c.h.s8.bf16 %v468
        %v793 = vunpack.c.h.s8.bf16 %v469
        %v794 = vunpack.c.h.s8.bf16 %v470
        %v795 = vunpack.c.l.s8.bf16 %v471
        %v796 = vunpack.c.l.s8.bf16 %v472
        %v797 = vunpack.c.l.s8.bf16 %v473
        %v798 = vunpack.c.l.s8.bf16 %v474
        %v799 = vunpack.c.h.s8.bf16 %v471
        %v800 = vunpack.c.h.s8.bf16 %v472
        %v801 = vunpack.c.h.s8.bf16 %v473
        %v802 = vunpack.c.h.s8.bf16 %v474
        %v803 = vunpack.c.l.s8.bf16 %v475
        %v804 = vunpack.c.l.s8.bf16 %v476
        %v805 = vunpack.c.l.s8.bf16 %v477
        %v806 = vunpack.c.l.s8.bf16 %v478
        %v807 = vunpack.c.h.s8.bf16 %v475
        %v808 = vunpack.c.h.s8.bf16 %v476
        %v809 = vunpack.c.h.s8.bf16 %v477
        %v810 = vunpack.c.h.s8.bf16 %v478
        %v811 = vunpack.c.l.s8.bf16 %v479
        %v812 = vunpack.c.l.s8.bf16 %v480
        %v813 = vunpack.c.l.s8.bf16 %v481
        %v814 = vunpack.c.l.s8.bf16 %v482
        %v815 = vunpack.c.h.s8.bf16 %v479
        %v816 = vunpack.c.h.s8.bf16 %v480
        %v817 = vunpack.c.h.s8.bf16 %v481
        %v818 = vunpack.c.h.s8.bf16 %v482
        %v819 = vunpack.c.l.s8.bf16 %v483
        %v820 = vunpack.c.l.s8.bf16 %v484
        %v821 = vunpack.c.l.s8.bf16 %v485
        %v822 = vunpack.c.l.s8.bf16 %v486
        %v823 = vunpack.c.h.s8.bf16 %v483
        %v824 = vunpack.c.h.s8.bf16 %v484
        %v825 = vunpack.c.h.s8.bf16 %v485
        %v826 = vunpack.c.h.s8.bf16 %v486
        %v827 = vunpack.c.l.s8.bf16 %v487
        %v828 = vunpack.c.l.s8.bf16 %v488
        %v829 = vunpack.c.l.s8.bf16 %v489
        %v830 = vunpack.c.l.s8.bf16 %v490
        %v831 = vunpack.c.h.s8.bf16 %v487
        %v832 = vunpack.c.h.s8.bf16 %v488
        %v833 = vunpack.c.h.s8.bf16 %v489
        %v834 = vunpack.c.h.s8.bf16 %v490
        %v835 = vunpack.c.l.s8.bf16 %v491
        %v836 = vunpack.c.l.s8.bf16 %v492
        %v837 = vunpack.c.l.s8.bf16 %v493
        %v838 = vunpack.c.l.s8.bf16 %v494
        %v839 = vunpack.c.h.s8.bf16 %v491
        %v840 = vunpack.c.h.s8.bf16 %v492
        %v841 = vunpack.c.h.s8.bf16 %v493
        %v842 = vunpack.c.h.s8.bf16 %v494
        %v843 = vunpack.c.l.s8.bf16 %v495
        %v844 = vunpack.c.l.s8.bf16 %v496
        %v845 = vunpack.c.l.s8.bf16 %v497
        %v846 = vunpack.c.l.s8.bf16 %v498
        %v847 = vunpack.c.h.s8.bf16 %v495
        %v848 = vunpack.c.h.s8.bf16 %v496
        %v849 = vunpack.c.h.s8.bf16 %v497
        %v850 = vunpack.c.h.s8.bf16 %v498
        %v851 = vunpack.c.l.s8.bf16 %v499
        %v852 = vunpack.c.l.s8.bf16 %v500
        %v853 = vunpack.c.l.s8.bf16 %v501
        %v854 = vunpack.c.l.s8.bf16 %v502
        %v855 = vunpack.c.h.s8.bf16 %v499
        %v856 = vunpack.c.h.s8.bf16 %v500
        %v857 = vunpack.c.h.s8.bf16 %v501
        %v858 = vunpack.c.h.s8.bf16 %v502
        %v859 = vunpack.c.l.s8.bf16 %v503
        %v860 = vunpack.c.l.s8.bf16 %v504
        %v861 = vunpack.c.l.s8.bf16 %v505
        %v862 = vunpack.c.l.s8.bf16 %v506
        %v863 = vunpack.c.h.s8.bf16 %v503
        %v864 = vunpack.c.h.s8.bf16 %v504
        %v865 = vunpack.c.h.s8.bf16 %v505
        %v866 = vunpack.c.h.s8.bf16 %v506
        %v867 = vunpack.c.l.s8.bf16 %v507
        %v868 = vunpack.c.l.s8.bf16 %v508
        %v869 = vunpack.c.l.s8.bf16 %v509
        %v870 = vunpack.c.l.s8.bf16 %v510
        %v871 = vunpack.c.h.s8.bf16 %v507
        %v872 = vunpack.c.h.s8.bf16 %v508
        %v873 = vunpack.c.h.s8.bf16 %v509
        %v874 = vunpack.c.h.s8.bf16 %v510
        %v875 = vunpack.c.l.s8.bf16 %v511
        %v876 = vunpack.c.l.s8.bf16 %v512
        %v877 = vunpack.c.l.s8.bf16 %v513
        %v878 = vunpack.c.l.s8.bf16 %v514
        %v879 = vunpack.c.h.s8.bf16 %v511
        %v880 = vunpack.c.h.s8.bf16 %v512
        %v881 = vunpack.c.h.s8.bf16 %v513
        %v882 = vunpack.c.h.s8.bf16 %v514
        %v883 = vunpack.c.l.s8.bf16 %v515
        %v884 = vunpack.c.l.s8.bf16 %v516
        %v885 = vunpack.c.l.s8.bf16 %v517
        %v886 = vunpack.c.l.s8.bf16 %v518
        %v887 = vunpack.c.h.s8.bf16 %v515
        %v888 = vunpack.c.h.s8.bf16 %v516
        %v889 = vunpack.c.h.s8.bf16 %v517
        %v890 = vunpack.c.h.s8.bf16 %v518
        %v891 = vunpack.c.l.s8.bf16 %v519
        %v892 = vunpack.c.l.s8.bf16 %v520
        %v893 = vunpack.c.l.s8.bf16 %v521
        %v894 = vunpack.c.l.s8.bf16 %v522
        %v895 = vunpack.c.h.s8.bf16 %v519
        %v896 = vunpack.c.h.s8.bf16 %v520
        %v897 = vunpack.c.h.s8.bf16 %v521
        %v898 = vunpack.c.h.s8.bf16 %v522
        %v899 = vunpack.c.l.s8.bf16 %v523
        %v900 = vunpack.c.l.s8.bf16 %v524
        %v901 = vunpack.c.l.s8.bf16 %v525
        %v902 = vunpack.c.l.s8.bf16 %v526
        %v903 = vunpack.c.h.s8.bf16 %v523
        %v904 = vunpack.c.h.s8.bf16 %v524
        %v905 = vunpack.c.h.s8.bf16 %v525
        %v906 = vunpack.c.h.s8.bf16 %v526
        %v907 = vunpack.c.l.s8.bf16 %v527
        %v908 = vunpack.c.l.s8.bf16 %v528
        %v909 = vunpack.c.l.s8.bf16 %v529
        %v910 = vunpack.c.l.s8.bf16 %v530
        %v911 = vunpack.c.h.s8.bf16 %v527
        %v912 = vunpack.c.h.s8.bf16 %v528
        %v913 = vunpack.c.h.s8.bf16 %v529
        %v914 = vunpack.c.h.s8.bf16 %v530
        %v915 = vunpack.c.l.s8.bf16 %v531
        %v916 = vunpack.c.l.s8.bf16 %v532
        %v917 = vunpack.c.l.s8.bf16 %v533
        %v918 = vunpack.c.l.s8.bf16 %v534
        %v919 = vunpack.c.h.s8.bf16 %v531
        %v920 = vunpack.c.h.s8.bf16 %v532
        %v921 = vunpack.c.h.s8.bf16 %v533
        %v922 = vunpack.c.h.s8.bf16 %v534
        %v923 = vunpack.c.l.s8.bf16 %v535
        %v924 = vunpack.c.l.s8.bf16 %v536
        %v925 = vunpack.c.l.s8.bf16 %v537
        %v926 = vunpack.c.l.s8.bf16 %v538
        %v927 = vunpack.c.h.s8.bf16 %v535
        %v928 = vunpack.c.h.s8.bf16 %v536
        %v929 = vunpack.c.h.s8.bf16 %v537
        %v930 = vunpack.c.h.s8.bf16 %v538
        %v931 = vunpack.c.l.s8.bf16 %v539
        %v932 = vunpack.c.l.s8.bf16 %v540
        %v933 = vunpack.c.l.s8.bf16 %v541
        %v934 = vunpack.c.l.s8.bf16 %v542
        %v935 = vunpack.c.h.s8.bf16 %v539
        %v936 = vunpack.c.h.s8.bf16 %v540
        %v937 = vunpack.c.h.s8.bf16 %v541
        %v938 = vunpack.c.h.s8.bf16 %v542
        %v939 = vunpack.c.l.s8.bf16 %v543
        %v940 = vunpack.c.l.s8.bf16 %v544
        %v941 = vunpack.c.l.s8.bf16 %v545
        %v942 = vunpack.c.l.s8.bf16 %v546
        %v943 = vunpack.c.h.s8.bf16 %v543
        %v944 = vunpack.c.h.s8.bf16 %v544
        %v945 = vunpack.c.h.s8.bf16 %v545
        %v946 = vunpack.c.h.s8.bf16 %v546
        %v947 = vunpack.c.l.s8.bf16 %v547
        %v948 = vunpack.c.l.s8.bf16 %v548
        %v949 = vunpack.c.l.s8.bf16 %v549
        %v950 = vunpack.c.l.s8.bf16 %v550
        %v951 = vunpack.c.h.s8.bf16 %v547
        %v952 = vunpack.c.h.s8.bf16 %v548
        %v953 = vunpack.c.h.s8.bf16 %v549
        %v954 = vunpack.c.h.s8.bf16 %v550
        %v955 = vunpack.c.l.s8.bf16 %v551
        %v956 = vunpack.c.l.s8.bf16 %v552
        %v957 = vunpack.c.l.s8.bf16 %v553
        %v958 = vunpack.c.l.s8.bf16 %v554
        %v959 = vunpack.c.h.s8.bf16 %v551
        %v960 = vunpack.c.h.s8.bf16 %v552
        %v961 = vunpack.c.h.s8.bf16 %v553
        %v962 = vunpack.c.h.s8.bf16 %v554
        %v963 = vunpack.c.l.s8.bf16 %v555
        %v964 = vunpack.c.l.s8.bf16 %v556
        %v965 = vunpack.c.l.s8.bf16 %v557
        %v966 = vunpack.c.l.s8.bf16 %v558
        %v967 = vunpack.c.h.s8.bf16 %v555
        %v968 = vunpack.c.h.s8.bf16 %v556
        %v969 = vunpack.c.h.s8.bf16 %v557
        %v970 = vunpack.c.h.s8.bf16 %v558
        %v971 = vunpack.c.l.s8.bf16 %v559
        %v972 = vunpack.c.l.s8.bf16 %v560
        %v973 = vunpack.c.l.s8.bf16 %v561
        %v974 = vunpack.c.l.s8.bf16 %v562
        %v975 = vunpack.c.h.s8.bf16 %v559
        %v976 = vunpack.c.h.s8.bf16 %v560
        %v977 = vunpack.c.h.s8.bf16 %v561
        %v978 = vunpack.c.h.s8.bf16 %v562
        %v979 = vunpack.c.l.s8.bf16 %v563
        %v980 = vunpack.c.l.s8.bf16 %v564
        %v981 = vunpack.c.l.s8.bf16 %v565
        %v982 = vunpack.c.l.s8.bf16 %v566
        %v983 = vunpack.c.h.s8.bf16 %v563
        %v984 = vunpack.c.h.s8.bf16 %v564
        %v985 = vunpack.c.h.s8.bf16 %v565
        %v986 = vunpack.c.h.s8.bf16 %v566
        %v987 = vunpack.c.l.s8.bf16 %v567
        %v988 = vunpack.c.l.s8.bf16 %v568
        %v989 = vunpack.c.l.s8.bf16 %v569
        %v990 = vunpack.c.l.s8.bf16 %v570
        %v991 = vunpack.c.h.s8.bf16 %v567
        %v992 = vunpack.c.h.s8.bf16 %v568
        %v993 = vunpack.c.h.s8.bf16 %v569
        %v994 = vunpack.c.h.s8.bf16 %v570
        %v995 = vunpack.c.l.s8.bf16 %v571
        %v996 = vunpack.c.l.s8.bf16 %v572
        %v997 = vunpack.c.l.s8.bf16 %v573
        %v998 = vunpack.c.l.s8.bf16 %v574
        %v999 = vunpack.c.h.s8.bf16 %v571
        %v1000 = vunpack.c.h.s8.bf16 %v572
        %v1001 = vunpack.c.h.s8.bf16 %v573
        %v1002 = vunpack.c.h.s8.bf16 %v574
        %v1003 = vunpack.c.l.s8.bf16 %v575
        %v1004 = vunpack.c.l.s8.bf16 %v576
        %v1005 = vunpack.c.l.s8.bf16 %v577
        %v1006 = vunpack.c.l.s8.bf16 %v578
        %v1007 = vunpack.c.h.s8.bf16 %v575
        %v1008 = vunpack.c.h.s8.bf16 %v576
        %v1009 = vunpack.c.h.s8.bf16 %v577
        %v1010 = vunpack.c.h.s8.bf16 %v578
        %v1011 = vunpack.c.l.s8.bf16 %v579
        %v1012 = vunpack.c.l.s8.bf16 %v580
        %v1013 = vunpack.c.l.s8.bf16 %v581
        %v1014 = vunpack.c.l.s8.bf16 %v582
        %v1015 = vunpack.c.h.s8.bf16 %v579
        %v1016 = vunpack.c.h.s8.bf16 %v580
        %v1017 = vunpack.c.h.s8.bf16 %v581
        %v1018 = vunpack.c.h.s8.bf16 %v582
        %v1019 = vunpack.c.l.s8.bf16 %v583
        %v1020 = vunpack.c.l.s8.bf16 %v584
        %v1021 = vunpack.c.l.s8.bf16 %v585
        %v1022 = vunpack.c.l.s8.bf16 %v586
        %v1023 = vunpack.c.h.s8.bf16 %v583
        %v1024 = vunpack.c.h.s8.bf16 %v584
        %v1025 = vunpack.c.h.s8.bf16 %v585
        %v1026 = vunpack.c.h.s8.bf16 %v586
        %v1027 = vunpack.c.l.s8.bf16 %v587
        %v1028 = vunpack.c.l.s8.bf16 %v588
        %v1029 = vunpack.c.l.s8.bf16 %v589
        %v1030 = vunpack.c.l.s8.bf16 %v590
        %v1031 = vunpack.c.h.s8.bf16 %v587
        %v1032 = vunpack.c.h.s8.bf16 %v588
        %v1033 = vunpack.c.h.s8.bf16 %v589
        %v1034 = vunpack.c.h.s8.bf16 %v590
        %v1035 = vunpack.c.l.s8.bf16 %v591
        %v1036 = vunpack.c.l.s8.bf16 %v592
        %v1037 = vunpack.c.l.s8.bf16 %v593
        %v1038 = vunpack.c.l.s8.bf16 %v594
        %v1039 = vunpack.c.h.s8.bf16 %v591
        %v1040 = vunpack.c.h.s8.bf16 %v592
        %v1041 = vunpack.c.h.s8.bf16 %v593
        %v1042 = vunpack.c.h.s8.bf16 %v594
        %v1043 = vunpack.c.l.s8.bf16 %v595
        %v1044 = vunpack.c.l.s8.bf16 %v596
        %v1045 = vunpack.c.l.s8.bf16 %v597
        %v1046 = vunpack.c.l.s8.bf16 %v598
        %v1047 = vunpack.c.h.s8.bf16 %v595
        %v1048 = vunpack.c.h.s8.bf16 %v596
        %v1049 = vunpack.c.h.s8.bf16 %v597
        %v1050 = vunpack.c.h.s8.bf16 %v598
        %v1051 = vunpack.c.l.s8.bf16 %v599
        %v1052 = vunpack.c.l.s8.bf16 %v600
        %v1053 = vunpack.c.l.s8.bf16 %v601
        %v1054 = vunpack.c.l.s8.bf16 %v602
        %v1055 = vunpack.c.h.s8.bf16 %v599
        %v1056 = vunpack.c.h.s8.bf16 %v600
        %v1057 = vunpack.c.h.s8.bf16 %v601
        %v1058 = vunpack.c.h.s8.bf16 %v602
        %v1059 = vunpack.c.l.s8.bf16 %v603
        %v1060 = vunpack.c.l.s8.bf16 %v604
        %v1061 = vunpack.c.l.s8.bf16 %v605
        %v1062 = vunpack.c.l.s8.bf16 %v606
        %v1063 = vunpack.c.h.s8.bf16 %v603
        %v1064 = vunpack.c.h.s8.bf16 %v604
        %v1065 = vunpack.c.h.s8.bf16 %v605
        %v1066 = vunpack.c.h.s8.bf16 %v606
        %v1067 = vunpack.c.l.s8.bf16 %v607
        %v1068 = vunpack.c.l.s8.bf16 %v608
        %v1069 = vunpack.c.l.s8.bf16 %v609
        %v1070 = vunpack.c.l.s8.bf16 %v610
        %v1071 = vunpack.c.h.s8.bf16 %v607
        %v1072 = vunpack.c.h.s8.bf16 %v608
        %v1073 = vunpack.c.h.s8.bf16 %v609
        %v1074 = vunpack.c.h.s8.bf16 %v610
        %v1075 = vunpack.c.l.s8.bf16 %v611
        %v1076 = vunpack.c.l.s8.bf16 %v612
        %v1077 = vunpack.c.l.s8.bf16 %v613
        %v1078 = vunpack.c.l.s8.bf16 %v614
        %v1079 = vunpack.c.h.s8.bf16 %v611
        %v1080 = vunpack.c.h.s8.bf16 %v612
        %v1081 = vunpack.c.h.s8.bf16 %v613
        %v1082 = vunpack.c.h.s8.bf16 %v614
        %v1083 = vunpack.c.l.s8.bf16 %v615
        %v1084 = vunpack.c.l.s8.bf16 %v616
        %v1085 = vunpack.c.l.s8.bf16 %v617
        %v1086 = vunpack.c.l.s8.bf16 %v618
        %v1087 = vunpack.c.h.s8.bf16 %v615
        %v1088 = vunpack.c.h.s8.bf16 %v616
        %v1089 = vunpack.c.h.s8.bf16 %v617
        %v1090 = vunpack.c.h.s8.bf16 %v618
        %v1091 = vunpack.c.l.s8.bf16 %v619
        %v1092 = vunpack.c.l.s8.bf16 %v620
        %v1093 = vunpack.c.l.s8.bf16 %v621
        %v1094 = vunpack.c.l.s8.bf16 %v622
        %v1095 = vunpack.c.h.s8.bf16 %v619
        %v1096 = vunpack.c.h.s8.bf16 %v620
        %v1097 = vunpack.c.h.s8.bf16 %v621
        %v1098 = vunpack.c.h.s8.bf16 %v622
        %v1099 = vunpack.c.l.s8.bf16 %v623
        %v1100 = vunpack.c.l.s8.bf16 %v624
        %v1101 = vunpack.c.l.s8.bf16 %v625
        %v1102 = vunpack.c.l.s8.bf16 %v626
        %v1103 = vunpack.c.h.s8.bf16 %v623
        %v1104 = vunpack.c.h.s8.bf16 %v624
        %v1105 = vunpack.c.h.s8.bf16 %v625
        %v1106 = vunpack.c.h.s8.bf16 %v626
        %v1107 = vunpack.c.l.s8.bf16 %v627
        %v1108 = vunpack.c.l.s8.bf16 %v628
        %v1109 = vunpack.c.l.s8.bf16 %v629
        %v1110 = vunpack.c.l.s8.bf16 %v630
        %v1111 = vunpack.c.h.s8.bf16 %v627
        %v1112 = vunpack.c.h.s8.bf16 %v628
        %v1113 = vunpack.c.h.s8.bf16 %v629
        %v1114 = vunpack.c.h.s8.bf16 %v630
        %v1115 = vunpack.c.l.s8.bf16 %v631
        %v1116 = vunpack.c.l.s8.bf16 %v632
        %v1117 = vunpack.c.l.s8.bf16 %v633
        %v1118 = vunpack.c.l.s8.bf16 %v634
        %v1119 = vunpack.c.h.s8.bf16 %v631
        %v1120 = vunpack.c.h.s8.bf16 %v632
        %v1121 = vunpack.c.h.s8.bf16 %v633
        %v1122 = vunpack.c.h.s8.bf16 %v634
        %v1123 = vunpack.c.l.s8.bf16 %v635
        %v1124 = vunpack.c.l.s8.bf16 %v636
        %v1125 = vunpack.c.l.s8.bf16 %v637
        %v1126 = vunpack.c.l.s8.bf16 %v638
        %v1127 = vunpack.c.h.s8.bf16 %v635
        %v1128 = vunpack.c.h.s8.bf16 %v636
        %v1129 = vunpack.c.h.s8.bf16 %v637
        %v1130 = vunpack.c.h.s8.bf16 %v638
        %v1131 = vunpack.c.l.s8.bf16 %v639
        %v1132 = vunpack.c.l.s8.bf16 %v640
        %v1133 = vunpack.c.l.s8.bf16 %v641
        %v1134 = vunpack.c.l.s8.bf16 %v642
        %v1135 = vunpack.c.h.s8.bf16 %v639
        %v1136 = vunpack.c.h.s8.bf16 %v640
        %v1137 = vunpack.c.h.s8.bf16 %v641
        %v1138 = vunpack.c.h.s8.bf16 %v642
        %v1139 = vunpack.c.l.s8.bf16 %v643
        %v1140 = vunpack.c.l.s8.bf16 %v644
        %v1141 = vunpack.c.l.s8.bf16 %v645
        %v1142 = vunpack.c.l.s8.bf16 %v646
        %v1143 = vunpack.c.h.s8.bf16 %v643
        %v1144 = vunpack.c.h.s8.bf16 %v644
        %v1145 = vunpack.c.h.s8.bf16 %v645
        %v1146 = vunpack.c.h.s8.bf16 %v646
        %v1147 = vunpack.c.l.s8.bf16 %v647
        %v1148 = vunpack.c.l.s8.bf16 %v648
        %v1149 = vunpack.c.l.s8.bf16 %v649
        %v1150 = vunpack.c.l.s8.bf16 %v650
        %v1151 = vunpack.c.h.s8.bf16 %v647
        %v1152 = vunpack.c.h.s8.bf16 %v648
        %v1153 = vunpack.c.h.s8.bf16 %v649
        %v1154 = vunpack.c.h.s8.bf16 %v650
        %v1155 = vunpack.c.l.s8.bf16 %v651
        %v1156 = vunpack.c.l.s8.bf16 %v652
        %v1157 = vunpack.c.l.s8.bf16 %v653
        %v1158 = vunpack.c.l.s8.bf16 %v654
        %v1159 = vunpack.c.h.s8.bf16 %v651
        %v1160 = vunpack.c.h.s8.bf16 %v652
        %v1161 = vunpack.c.h.s8.bf16 %v653
        %v1162 = vunpack.c.h.s8.bf16 %v654
        %v1163 = vunpack.c.l.s8.bf16 %v655
        %v1164 = vunpack.c.l.s8.bf16 %v656
        %v1165 = vunpack.c.l.s8.bf16 %v657
        %v1166 = vunpack.c.l.s8.bf16 %v658
        %v1167 = vunpack.c.h.s8.bf16 %v655
        %v1168 = vunpack.c.h.s8.bf16 %v656
        %v1169 = vunpack.c.h.s8.bf16 %v657
        %v1170 = vunpack.c.h.s8.bf16 %v658
        %1171 = vmatprep.subr.bf16.mxu0 %v688
        %1172 = vmatpush1.bf16.msra.mxu0 %v687
        %1173 = vmatprep.subr.bf16.mxu0 %v684
        %1174 = vmatpush1.bf16.msra.mxu0 %v683
        %1175 = vmatprep.subr.bf16.mxu0 %v680
        %1176 = vmatpush1.bf16.msra.mxu0 %v679
        %1177 = vmatprep.subr.bf16.mxu0 %v676
        %1178 = vmatpush1.bf16.msra.mxu0 %v675
        %1179 = vmatprep.subr.bf16.mxu0 %v672
        %1180 = vmatpush1.bf16.msra.mxu0 %v671
        %1181 = vmatprep.subr.bf16.mxu0 %v668
        %1182 = vmatpush1.bf16.msra.mxu0 %v667
        %1183 = vmatprep.subr.bf16.mxu0 %v664
        %1184 = vmatpush1.bf16.msra.mxu0 %v663
        %1185 = vmatprep.subr.bf16.mxu0 %v660
        %1186 = vmatpush1.bf16.msra.mxu0 %v659
        %1187 = vmatprep.subr.bf16.mxu0 %v720
        %1188 = vmatpush2.bf16.msra.mxu0 %v719
        %1189 = vmatprep.subr.bf16.mxu0 %v716
        %1190 = vmatpush2.bf16.msra.mxu0 %v715
        %1191 = vmatprep.subr.bf16.mxu0 %v712
        %1192 = vmatpush2.bf16.msra.mxu0 %v711
        %1193 = vmatprep.subr.bf16.mxu0 %v708
        %1194 = vmatpush2.bf16.msra.mxu0 %v707
        %1195 = vmatprep.subr.bf16.mxu0 %v704
        %1196 = vmatpush2.bf16.msra.mxu0 %v703
        %1197 = vmatprep.subr.bf16.mxu0 %v700
        %1198 = vmatpush2.bf16.msra.mxu0 %v699
        %1199 = vmatprep.subr.bf16.mxu0 %v696
        %1200 = vmatpush2.bf16.msra.mxu0 %v695
        %1201 = vmatprep.subr.bf16.mxu0 %v692
        %1202 = vmatpush2.bf16.msra.mxu0 %v691
        %1203 = vmatprep.mubr.bf16.mxu0 %v388
        %1204 = vmatmul.mubr.bf16.gmra.mxu0 %v387
        %v1205 = vpop.f32.mrf.mxu0
        %v1206 = vadd.f32 0.0, %v1205
        %v1207 = vpop.f32.mrf.mxu0
        %v1208 = vadd.f32 0.0, %v1207
        %v1209 = vpop.f32.mrf.mxu0
        %v1210 = vpop.f32.mrf.mxu0
        %1211 = vdwg.mxu0
        %1212 = vmatprep.subr.bf16.mxu0 %v752
        %1213 = vmatpush1.bf16.msra.mxu0 %v751
        %1214 = vmatprep.subr.bf16.mxu0 %v748
        %1215 = vmatpush1.bf16.msra.mxu0 %v747
        %1216 = vmatprep.subr.bf16.mxu0 %v744
        %1217 = vmatpush1.bf16.msra.mxu0 %v743
        %1218 = vmatprep.subr.bf16.mxu0 %v740
        %1219 = vmatpush1.bf16.msra.mxu0 %v739
        %1220 = vmatprep.subr.bf16.mxu0 %v736
        %1221 = vmatpush1.bf16.msra.mxu0 %v735
        %1222 = vmatprep.subr.bf16.mxu0 %v732
        %1223 = vmatpush1.bf16.msra.mxu0 %v731
        %1224 = vmatprep.subr.bf16.mxu0 %v728
        %1225 = vmatpush1.bf16.msra.mxu0 %v727
        %1226 = vmatprep.subr.bf16.mxu0 %v724
        %1227 = vmatpush1.bf16.msra.mxu0 %v723
        %1228 = vmatprep.subr.bf16.mxu0 %v784
        %1229 = vmatpush2.bf16.msra.mxu0 %v783
        %1230 = vmatprep.subr.bf16.mxu0 %v780
        %1231 = vmatpush2.bf16.msra.mxu0 %v779
        %1232 = vmatprep.subr.bf16.mxu0 %v776
        %1233 = vmatpush2.bf16.msra.mxu0 %v775
        %1234 = vmatprep.subr.bf16.mxu0 %v772
        %1235 = vmatpush2.bf16.msra.mxu0 %v771
        %1236 = vmatprep.subr.bf16.mxu0 %v768
        %1237 = vmatpush2.bf16.msra.mxu0 %v767
        %1238 = vmatprep.subr.bf16.mxu0 %v764
        %1239 = vmatpush2.bf16.msra.mxu0 %v763
        %1240 = vmatprep.subr.bf16.mxu0 %v760
        %1241 = vmatpush2.bf16.msra.mxu0 %v759
        %1242 = vmatprep.subr.bf16.mxu0 %v756
        %1243 = vmatpush2.bf16.msra.mxu0 %v755
        %1244 = vmatprep.mubr.bf16.mxu0 %v390
        %1245 = vmatmul.mubr.bf16.gmra.mxu0 %v389
        %v1246 = vpop.f32.mrf.mxu0
        %v1247 = vadd.f32 %v1206, %v1246
        %v1248 = vpop.f32.mrf.mxu0
        %v1249 = vadd.f32 %v1208, %v1248
        %v1250 = vpop.f32.mrf.mxu0
        %v1251 = vpop.f32.mrf.mxu0
        %1252 = vdwg.mxu0
        %1253 = vmatprep.subr.bf16.mxu0 %v816
        %1254 = vmatpush1.bf16.msra.mxu0 %v815
        %1255 = vmatprep.subr.bf16.mxu0 %v812
        %1256 = vmatpush1.bf16.msra.mxu0 %v811
        %1257 = vmatprep.subr.bf16.mxu0 %v808
        %1258 = vmatpush1.bf16.msra.mxu0 %v807
        %1259 = vmatprep.subr.bf16.mxu0 %v804
        %1260 = vmatpush1.bf16.msra.mxu0 %v803
        %1261 = vmatprep.subr.bf16.mxu0 %v800
        %1262 = vmatpush1.bf16.msra.mxu0 %v799
        %1263 = vmatprep.subr.bf16.mxu0 %v796
        %1264 = vmatpush1.bf16.msra.mxu0 %v795
        %1265 = vmatprep.subr.bf16.mxu0 %v792
        %1266 = vmatpush1.bf16.msra.mxu0 %v791
        %1267 = vmatprep.subr.bf16.mxu0 %v788
        %1268 = vmatpush1.bf16.msra.mxu0 %v787
        %1269 = vmatprep.subr.bf16.mxu0 %v848
        %1270 = vmatpush2.bf16.msra.mxu0 %v847
        %1271 = vmatprep.subr.bf16.mxu0 %v844
        %1272 = vmatpush2.bf16.msra.mxu0 %v843
        %1273 = vmatprep.subr.bf16.mxu0 %v840
        %1274 = vmatpush2.bf16.msra.mxu0 %v839
        %1275 = vmatprep.subr.bf16.mxu0 %v836
        %1276 = vmatpush2.bf16.msra.mxu0 %v835
        %1277 = vmatprep.subr.bf16.mxu0 %v832
        %1278 = vmatpush2.bf16.msra.mxu0 %v831
        %1279 = vmatprep.subr.bf16.mxu0 %v828
        %1280 = vmatpush2.bf16.msra.mxu0 %v827
        %1281 = vmatprep.subr.bf16.mxu0 %v824
        %1282 = vmatpush2.bf16.msra.mxu0 %v823
        %1283 = vmatprep.subr.bf16.mxu0 %v820
        %1284 = vmatpush2.bf16.msra.mxu0 %v819
        %1285 = vmatprep.mubr.bf16.mxu0 %v392
        %1286 = vmatmul.mubr.bf16.gmra.mxu0 %v391
        %v1287 = vpop.f32.mrf.mxu0
        %v1288 = vadd.f32 %v1247, %v1287
        %v1289 = vpop.f32.mrf.mxu0
        %v1290 = vadd.f32 %v1249, %v1289
        %v1291 = vpop.f32.mrf.mxu0
        %v1292 = vpop.f32.mrf.mxu0
        %1293 = vdwg.mxu0
        %1294 = vmatprep.subr.bf16.mxu0 %v880
        %1295 = vmatpush1.bf16.msra.mxu0 %v879
        %1296 = vmatprep.subr.bf16.mxu0 %v876
        %1297 = vmatpush1.bf16.msra.mxu0 %v875
        %1298 = vmatprep.subr.bf16.mxu0 %v872
        %1299 = vmatpush1.bf16.msra.mxu0 %v871
        %1300 = vmatprep.subr.bf16.mxu0 %v868
        %1301 = vmatpush1.bf16.msra.mxu0 %v867
        %1302 = vmatprep.subr.bf16.mxu0 %v864
        %1303 = vmatpush1.bf16.msra.mxu0 %v863
        %1304 = vmatprep.subr.bf16.mxu0 %v860
        %1305 = vmatpush1.bf16.msra.mxu0 %v859
        %1306 = vmatprep.subr.bf16.mxu0 %v856
        %1307 = vmatpush1.bf16.msra.mxu0 %v855
        %1308 = vmatprep.subr.bf16.mxu0 %v852
        %1309 = vmatpush1.bf16.msra.mxu0 %v851
        %1310 = vmatprep.subr.bf16.mxu0 %v912
        %1311 = vmatpush2.bf16.msra.mxu0 %v911
        %1312 = vmatprep.subr.bf16.mxu0 %v908
        %1313 = vmatpush2.bf16.msra.mxu0 %v907
        %1314 = vmatprep.subr.bf16.mxu0 %v904
        %1315 = vmatpush2.bf16.msra.mxu0 %v903
        %1316 = vmatprep.subr.bf16.mxu0 %v900
        %1317 = vmatpush2.bf16.msra.mxu0 %v899
        %1318 = vmatprep.subr.bf16.mxu0 %v896
        %1319 = vmatpush2.bf16.msra.mxu0 %v895
        %1320 = vmatprep.subr.bf16.mxu0 %v892
        %1321 = vmatpush2.bf16.msra.mxu0 %v891
        %1322 = vmatprep.subr.bf16.mxu0 %v888
        %1323 = vmatpush2.bf16.msra.mxu0 %v887
        %1324 = vmatprep.subr.bf16.mxu0 %v884
        %1325 = vmatpush2.bf16.msra.mxu0 %v883
        %1326 = vmatprep.mubr.bf16.mxu0 %v394
        %1327 = vmatmul.mubr.bf16.gmra.mxu0 %v393
        %v1328 = vpop.f32.mrf.mxu0
        %v1329 = vadd.f32 %v1288, %v1328
        %v1330 = vpop.f32.mrf.mxu0
        %v1331 = vadd.f32 %v1290, %v1330
        %v1332 = vpop.f32.mrf.mxu0
        %v1333 = vpop.f32.mrf.mxu0
        %1334 = vdwg.mxu0
        %1335 = vmatprep.subr.bf16.mxu0 %v944
        %1336 = vmatpush1.bf16.msra.mxu0 %v943
        %1337 = vmatprep.subr.bf16.mxu0 %v940
        %1338 = vmatpush1.bf16.msra.mxu0 %v939
        %1339 = vmatprep.subr.bf16.mxu0 %v936
        %1340 = vmatpush1.bf16.msra.mxu0 %v935
        %1341 = vmatprep.subr.bf16.mxu0 %v932
        %1342 = vmatpush1.bf16.msra.mxu0 %v931
        %1343 = vmatprep.subr.bf16.mxu0 %v928
        %1344 = vmatpush1.bf16.msra.mxu0 %v927
        %1345 = vmatprep.subr.bf16.mxu0 %v924
        %1346 = vmatpush1.bf16.msra.mxu0 %v923
        %1347 = vmatprep.subr.bf16.mxu0 %v920
        %1348 = vmatpush1.bf16.msra.mxu0 %v919
        %1349 = vmatprep.subr.bf16.mxu0 %v916
        %1350 = vmatpush1.bf16.msra.mxu0 %v915
        %1351 = vmatprep.subr.bf16.mxu0 %v976
        %1352 = vmatpush2.bf16.msra.mxu0 %v975
        %1353 = vmatprep.subr.bf16.mxu0 %v972
        %1354 = vmatpush2.bf16.msra.mxu0 %v971
        %1355 = vmatprep.subr.bf16.mxu0 %v968
        %1356 = vmatpush2.bf16.msra.mxu0 %v967
        %1357 = vmatprep.subr.bf16.mxu0 %v964
        %1358 = vmatpush2.bf16.msra.mxu0 %v963
        %1359 = vmatprep.subr.bf16.mxu0 %v960
        %1360 = vmatpush2.bf16.msra.mxu0 %v959
        %1361 = vmatprep.subr.bf16.mxu0 %v956
        %1362 = vmatpush2.bf16.msra.mxu0 %v955
        %1363 = vmatprep.subr.bf16.mxu0 %v952
        %1364 = vmatpush2.bf16.msra.mxu0 %v951
        %1365 = vmatprep.subr.bf16.mxu0 %v948
        %1366 = vmatpush2.bf16.msra.mxu0 %v947
        %1367 = vmatprep.mubr.bf16.mxu0 %v396
        %1368 = vmatmul.mubr.bf16.gmra.mxu0 %v395
        %v1369 = vpop.f32.mrf.mxu0
        %v1370 = vadd.f32 %v1329, %v1369
        %v1371 = vpop.f32.mrf.mxu0
        %v1372 = vadd.f32 %v1331, %v1371
        %v1373 = vpop.f32.mrf.mxu0
        %v1374 = vpop.f32.mrf.mxu0
        %1375 = vdwg.mxu0
        %1376 = vmatprep.subr.bf16.mxu0 %v1008
        %1377 = vmatpush1.bf16.msra.mxu0 %v1007
        %1378 = vmatprep.subr.bf16.mxu0 %v1004
        %1379 = vmatpush1.bf16.msra.mxu0 %v1003
        %1380 = vmatprep.subr.bf16.mxu0 %v1000
        %1381 = vmatpush1.bf16.msra.mxu0 %v999
        %1382 = vmatprep.subr.bf16.mxu0 %v996
        %1383 = vmatpush1.bf16.msra.mxu0 %v995
        %1384 = vmatprep.subr.bf16.mxu0 %v992
        %1385 = vmatpush1.bf16.msra.mxu0 %v991
        %1386 = vmatprep.subr.bf16.mxu0 %v988
        %1387 = vmatpush1.bf16.msra.mxu0 %v987
        %1388 = vmatprep.subr.bf16.mxu0 %v984
        %1389 = vmatpush1.bf16.msra.mxu0 %v983
        %1390 = vmatprep.subr.bf16.mxu0 %v980
        %1391 = vmatpush1.bf16.msra.mxu0 %v979
        %1392 = vmatprep.subr.bf16.mxu0 %v1040
        %1393 = vmatpush2.bf16.msra.mxu0 %v1039
        %1394 = vmatprep.subr.bf16.mxu0 %v1036
        %1395 = vmatpush2.bf16.msra.mxu0 %v1035
        %1396 = vmatprep.subr.bf16.mxu0 %v1032
        %1397 = vmatpush2.bf16.msra.mxu0 %v1031
        %1398 = vmatprep.subr.bf16.mxu0 %v1028
        %1399 = vmatpush2.bf16.msra.mxu0 %v1027
        %1400 = vmatprep.subr.bf16.mxu0 %v1024
        %1401 = vmatpush2.bf16.msra.mxu0 %v1023
        %1402 = vmatprep.subr.bf16.mxu0 %v1020
        %1403 = vmatpush2.bf16.msra.mxu0 %v1019
        %1404 = vmatprep.subr.bf16.mxu0 %v1016
        %1405 = vmatpush2.bf16.msra.mxu0 %v1015
        %1406 = vmatprep.subr.bf16.mxu0 %v1012
        %1407 = vmatpush2.bf16.msra.mxu0 %v1011
        %1408 = vmatprep.mubr.bf16.mxu0 %v398
        %1409 = vmatmul.mubr.bf16.gmra.mxu0 %v397
        %v1410 = vpop.f32.mrf.mxu0
        %v1411 = vadd.f32 %v1370, %v1410
        %v1412 = vpop.f32.mrf.mxu0
        %v1413 = vadd.f32 %v1372, %v1412
        %v1414 = vpop.f32.mrf.mxu0
        %v1415 = vpop.f32.mrf.mxu0
        %1416 = vdwg.mxu0
        %1417 = vmatprep.subr.bf16.mxu0 %v1072
        %1418 = vmatpush1.bf16.msra.mxu0 %v1071
        %1419 = vmatprep.subr.bf16.mxu0 %v1068
        %1420 = vmatpush1.bf16.msra.mxu0 %v1067
        %1421 = vmatprep.subr.bf16.mxu0 %v1064
        %1422 = vmatpush1.bf16.msra.mxu0 %v1063
        %1423 = vmatprep.subr.bf16.mxu0 %v1060
        %1424 = vmatpush1.bf16.msra.mxu0 %v1059
        %1425 = vmatprep.subr.bf16.mxu0 %v1056
        %1426 = vmatpush1.bf16.msra.mxu0 %v1055
        %1427 = vmatprep.subr.bf16.mxu0 %v1052
        %1428 = vmatpush1.bf16.msra.mxu0 %v1051
        %1429 = vmatprep.subr.bf16.mxu0 %v1048
        %1430 = vmatpush1.bf16.msra.mxu0 %v1047
        %1431 = vmatprep.subr.bf16.mxu0 %v1044
        %1432 = vmatpush1.bf16.msra.mxu0 %v1043
        %1433 = vmatprep.subr.bf16.mxu0 %v1104
        %1434 = vmatpush2.bf16.msra.mxu0 %v1103
        %1435 = vmatprep.subr.bf16.mxu0 %v1100
        %1436 = vmatpush2.bf16.msra.mxu0 %v1099
        %1437 = vmatprep.subr.bf16.mxu0 %v1096
        %1438 = vmatpush2.bf16.msra.mxu0 %v1095
        %1439 = vmatprep.subr.bf16.mxu0 %v1092
        %1440 = vmatpush2.bf16.msra.mxu0 %v1091
        %1441 = vmatprep.subr.bf16.mxu0 %v1088
        %1442 = vmatpush2.bf16.msra.mxu0 %v1087
        %1443 = vmatprep.subr.bf16.mxu0 %v1084
        %1444 = vmatpush2.bf16.msra.mxu0 %v1083
        %1445 = vmatprep.subr.bf16.mxu0 %v1080
        %1446 = vmatpush2.bf16.msra.mxu0 %v1079
        %1447 = vmatprep.subr.bf16.mxu0 %v1076
        %1448 = vmatpush2.bf16.msra.mxu0 %v1075
        %1449 = vmatprep.mubr.bf16.mxu0 %v400
        %1450 = vmatmul.mubr.bf16.gmra.mxu0 %v399
        %v1451 = vpop.f32.mrf.mxu0
        %v1452 = vadd.f32 %v1411, %v1451
        %v1453 = vpop.f32.mrf.mxu0
        %v1454 = vadd.f32 %v1413, %v1453
        %v1455 = vpop.f32.mrf.mxu0
        %v1456 = vpop.f32.mrf.mxu0
        %1457 = vdwg.mxu0
        %1458 = vmatprep.subr.bf16.mxu0 %v1136
        %1459 = vmatpush1.bf16.msra.mxu0 %v1135
        %1460 = vmatprep.subr.bf16.mxu0 %v1132
        %1461 = vmatpush1.bf16.msra.mxu0 %v1131
        %1462 = vmatprep.subr.bf16.mxu0 %v1128
        %1463 = vmatpush1.bf16.msra.mxu0 %v1127
        %1464 = vmatprep.subr.bf16.mxu0 %v1124
        %1465 = vmatpush1.bf16.msra.mxu0 %v1123
        %1466 = vmatprep.subr.bf16.mxu0 %v1120
        %1467 = vmatpush1.bf16.msra.mxu0 %v1119
        %1468 = vmatprep.subr.bf16.mxu0 %v1116
        %1469 = vmatpush1.bf16.msra.mxu0 %v1115
        %1470 = vmatprep.subr.bf16.mxu0 %v1112
        %1471 = vmatpush1.bf16.msra.mxu0 %v1111
        %1472 = vmatprep.subr.bf16.mxu0 %v1108
        %1473 = vmatpush1.bf16.msra.mxu0 %v1107
        %1474 = vmatprep.subr.bf16.mxu0 %v1168
        %1475 = vmatpush2.bf16.msra.mxu0 %v1167
        %1476 = vmatprep.subr.bf16.mxu0 %v1164
        %1477 = vmatpush2.bf16.msra.mxu0 %v1163
        %1478 = vmatprep.subr.bf16.mxu0 %v1160
        %1479 = vmatpush2.bf16.msra.mxu0 %v1159
        %1480 = vmatprep.subr.bf16.mxu0 %v1156
        %1481 = vmatpush2.bf16.msra.mxu0 %v1155
        %1482 = vmatprep.subr.bf16.mxu0 %v1152
        %1483 = vmatpush2.bf16.msra.mxu0 %v1151
        %1484 = vmatprep.subr.bf16.mxu0 %v1148
        %1485 = vmatpush2.bf16.msra.mxu0 %v1147
        %1486 = vmatprep.subr.bf16.mxu0 %v1144
        %1487 = vmatpush2.bf16.msra.mxu0 %v1143
        %1488 = vmatprep.subr.bf16.mxu0 %v1140
        %1489 = vmatpush2.bf16.msra.mxu0 %v1139
        %1490 = vmatprep.mubr.bf16.mxu0 %v402
        %1491 = vmatmul.mubr.bf16.gmra.mxu0 %v401
        %v1492 = vpop.f32.mrf.mxu0
        %v1493 = vadd.f32 %v1452, %v1492
        %v1494 = vpop.f32.mrf.mxu0
        %v1495 = vadd.f32 %v1454, %v1494
        %v1496 = vpop.f32.mrf.mxu0
        %v1497 = vpop.f32.mrf.mxu0
        %1498 = vdwg.mxu0
        %1499 = vmatprep.subr.bf16.mxu0 %v690
        %1500 = vmatpush1.bf16.msra.mxu0 %v689
        %1501 = vmatprep.subr.bf16.mxu0 %v686
        %1502 = vmatpush1.bf16.msra.mxu0 %v685
        %1503 = vmatprep.subr.bf16.mxu0 %v682
        %1504 = vmatpush1.bf16.msra.mxu0 %v681
        %1505 = vmatprep.subr.bf16.mxu0 %v678
        %1506 = vmatpush1.bf16.msra.mxu0 %v677
        %1507 = vmatprep.subr.bf16.mxu0 %v674
        %1508 = vmatpush1.bf16.msra.mxu0 %v673
        %1509 = vmatprep.subr.bf16.mxu0 %v670
        %1510 = vmatpush1.bf16.msra.mxu0 %v669
        %1511 = vmatprep.subr.bf16.mxu0 %v666
        %1512 = vmatpush1.bf16.msra.mxu0 %v665
        %1513 = vmatprep.subr.bf16.mxu0 %v662
        %1514 = vmatpush1.bf16.msra.mxu0 %v661
        %1515 = vmatprep.subr.bf16.mxu0 %v722
        %1516 = vmatpush2.bf16.msra.mxu0 %v721
        %1517 = vmatprep.subr.bf16.mxu0 %v718
        %1518 = vmatpush2.bf16.msra.mxu0 %v717
        %1519 = vmatprep.subr.bf16.mxu0 %v714
        %1520 = vmatpush2.bf16.msra.mxu0 %v713
        %1521 = vmatprep.subr.bf16.mxu0 %v710
        %1522 = vmatpush2.bf16.msra.mxu0 %v709
        %1523 = vmatprep.subr.bf16.mxu0 %v706
        %1524 = vmatpush2.bf16.msra.mxu0 %v705
        %1525 = vmatprep.subr.bf16.mxu0 %v702
        %1526 = vmatpush2.bf16.msra.mxu0 %v701
        %1527 = vmatprep.subr.bf16.mxu0 %v698
        %1528 = vmatpush2.bf16.msra.mxu0 %v697
        %1529 = vmatprep.subr.bf16.mxu0 %v694
        %1530 = vmatpush2.bf16.msra.mxu0 %v693
        %1531 = vmatprep.mubr.bf16.mxu0 %v388
        %1532 = vmatmul.mubr.bf16.gmra.mxu0 %v387
        %v1533 = vpop.f32.mrf.mxu0
        %v1534 = vadd.f32 0.0, %v1533
        %v1535 = vpop.f32.mrf.mxu0
        %v1536 = vadd.f32 0.0, %v1535
        %v1537 = vpop.f32.mrf.mxu0
        %v1538 = vpop.f32.mrf.mxu0
        %1539 = vdwg.mxu0
        %1540 = vmatprep.subr.bf16.mxu0 %v754
        %1541 = vmatpush1.bf16.msra.mxu0 %v753
        %1542 = vmatprep.subr.bf16.mxu0 %v750
        %1543 = vmatpush1.bf16.msra.mxu0 %v749
        %1544 = vmatprep.subr.bf16.mxu0 %v746
        %1545 = vmatpush1.bf16.msra.mxu0 %v745
        %1546 = vmatprep.subr.bf16.mxu0 %v742
        %1547 = vmatpush1.bf16.msra.mxu0 %v741
        %1548 = vmatprep.subr.bf16.mxu0 %v738
        %1549 = vmatpush1.bf16.msra.mxu0 %v737
        %1550 = vmatprep.subr.bf16.mxu0 %v734
        %1551 = vmatpush1.bf16.msra.mxu0 %v733
        %1552 = vmatprep.subr.bf16.mxu0 %v730
        %1553 = vmatpush1.bf16.msra.mxu0 %v729
        %1554 = vmatprep.subr.bf16.mxu0 %v726
        %1555 = vmatpush1.bf16.msra.mxu0 %v725
        %1556 = vmatprep.subr.bf16.mxu0 %v786
        %1557 = vmatpush2.bf16.msra.mxu0 %v785
        %1558 = vmatprep.subr.bf16.mxu0 %v782
        %1559 = vmatpush2.bf16.msra.mxu0 %v781
        %1560 = vmatprep.subr.bf16.mxu0 %v778
        %1561 = vmatpush2.bf16.msra.mxu0 %v777
        %1562 = vmatprep.subr.bf16.mxu0 %v774
        %1563 = vmatpush2.bf16.msra.mxu0 %v773
        %1564 = vmatprep.subr.bf16.mxu0 %v770
        %1565 = vmatpush2.bf16.msra.mxu0 %v769
        %1566 = vmatprep.subr.bf16.mxu0 %v766
        %1567 = vmatpush2.bf16.msra.mxu0 %v765
        %1568 = vmatprep.subr.bf16.mxu0 %v762
        %1569 = vmatpush2.bf16.msra.mxu0 %v761
        %1570 = vmatprep.subr.bf16.mxu0 %v758
        %1571 = vmatpush2.bf16.msra.mxu0 %v757
        %1572 = vmatprep.mubr.bf16.mxu0 %v390
        %1573 = vmatmul.mubr.bf16.gmra.mxu0 %v389
        %v1574 = vpop.f32.mrf.mxu0
        %v1575 = vadd.f32 %v1534, %v1574
        %v1576 = vpop.f32.mrf.mxu0
        %v1577 = vadd.f32 %v1536, %v1576
        %v1578 = vpop.f32.mrf.mxu0
        %v1579 = vpop.f32.mrf.mxu0
        %1580 = vdwg.mxu0
        %1581 = vmatprep.subr.bf16.mxu0 %v818
        %1582 = vmatpush1.bf16.msra.mxu0 %v817
        %1583 = vmatprep.subr.bf16.mxu0 %v814
        %1584 = vmatpush1.bf16.msra.mxu0 %v813
        %1585 = vmatprep.subr.bf16.mxu0 %v810
        %1586 = vmatpush1.bf16.msra.mxu0 %v809
        %1587 = vmatprep.subr.bf16.mxu0 %v806
        %1588 = vmatpush1.bf16.msra.mxu0 %v805
        %1589 = vmatprep.subr.bf16.mxu0 %v802
        %1590 = vmatpush1.bf16.msra.mxu0 %v801
        %1591 = vmatprep.subr.bf16.mxu0 %v798
        %1592 = vmatpush1.bf16.msra.mxu0 %v797
        %1593 = vmatprep.subr.bf16.mxu0 %v794
        %1594 = vmatpush1.bf16.msra.mxu0 %v793
        %1595 = vmatprep.subr.bf16.mxu0 %v790
        %1596 = vmatpush1.bf16.msra.mxu0 %v789
        %1597 = vmatprep.subr.bf16.mxu0 %v850
        %1598 = vmatpush2.bf16.msra.mxu0 %v849
        %1599 = vmatprep.subr.bf16.mxu0 %v846
        %1600 = vmatpush2.bf16.msra.mxu0 %v845
        %1601 = vmatprep.subr.bf16.mxu0 %v842
        %1602 = vmatpush2.bf16.msra.mxu0 %v841
        %1603 = vmatprep.subr.bf16.mxu0 %v838
        %1604 = vmatpush2.bf16.msra.mxu0 %v837
        %1605 = vmatprep.subr.bf16.mxu0 %v834
        %1606 = vmatpush2.bf16.msra.mxu0 %v833
        %1607 = vmatprep.subr.bf16.mxu0 %v830
        %1608 = vmatpush2.bf16.msra.mxu0 %v829
        %1609 = vmatprep.subr.bf16.mxu0 %v826
        %1610 = vmatpush2.bf16.msra.mxu0 %v825
        %1611 = vmatprep.subr.bf16.mxu0 %v822
        %1612 = vmatpush2.bf16.msra.mxu0 %v821
        %1613 = vmatprep.mubr.bf16.mxu0 %v392
        %1614 = vmatmul.mubr.bf16.gmra.mxu0 %v391
        %v1615 = vpop.f32.mrf.mxu0
        %v1616 = vadd.f32 %v1575, %v1615
        %v1617 = vpop.f32.mrf.mxu0
        %v1618 = vadd.f32 %v1577, %v1617
        %v1619 = vpop.f32.mrf.mxu0
        %v1620 = vpop.f32.mrf.mxu0
        %1621 = vdwg.mxu0
        %1622 = vmatprep.subr.bf16.mxu0 %v882
        %1623 = vmatpush1.bf16.msra.mxu0 %v881
        %1624 = vmatprep.subr.bf16.mxu0 %v878
        %1625 = vmatpush1.bf16.msra.mxu0 %v877
        %1626 = vmatprep.subr.bf16.mxu0 %v874
        %1627 = vmatpush1.bf16.msra.mxu0 %v873
        %1628 = vmatprep.subr.bf16.mxu0 %v870
        %1629 = vmatpush1.bf16.msra.mxu0 %v869
        %1630 = vmatprep.subr.bf16.mxu0 %v866
        %1631 = vmatpush1.bf16.msra.mxu0 %v865
        %1632 = vmatprep.subr.bf16.mxu0 %v862
        %1633 = vmatpush1.bf16.msra.mxu0 %v861
        %1634 = vmatprep.subr.bf16.mxu0 %v858
        %1635 = vmatpush1.bf16.msra.mxu0 %v857
        %1636 = vmatprep.subr.bf16.mxu0 %v854
        %1637 = vmatpush1.bf16.msra.mxu0 %v853
        %1638 = vmatprep.subr.bf16.mxu0 %v914
        %1639 = vmatpush2.bf16.msra.mxu0 %v913
        %1640 = vmatprep.subr.bf16.mxu0 %v910
        %1641 = vmatpush2.bf16.msra.mxu0 %v909
        %1642 = vmatprep.subr.bf16.mxu0 %v906
        %1643 = vmatpush2.bf16.msra.mxu0 %v905
        %1644 = vmatprep.subr.bf16.mxu0 %v902
        %1645 = vmatpush2.bf16.msra.mxu0 %v901
        %1646 = vmatprep.subr.bf16.mxu0 %v898
        %1647 = vmatpush2.bf16.msra.mxu0 %v897
        %1648 = vmatprep.subr.bf16.mxu0 %v894
        %1649 = vmatpush2.bf16.msra.mxu0 %v893
        %1650 = vmatprep.subr.bf16.mxu0 %v890
        %1651 = vmatpush2.bf16.msra.mxu0 %v889
        %1652 = vmatprep.subr.bf16.mxu0 %v886
        %1653 = vmatpush2.bf16.msra.mxu0 %v885
        %1654 = vmatprep.mubr.bf16.mxu0 %v394
        %1655 = vmatmul.mubr.bf16.gmra.mxu0 %v393
        %v1656 = vpop.f32.mrf.mxu0
        %v1657 = vadd.f32 %v1616, %v1656
        %v1658 = vpop.f32.mrf.mxu0
        %v1659 = vadd.f32 %v1618, %v1658
        %v1660 = vpop.f32.mrf.mxu0
        %v1661 = vpop.f32.mrf.mxu0
        %1662 = vdwg.mxu0
        %1663 = vmatprep.subr.bf16.mxu0 %v946
        %1664 = vmatpush1.bf16.msra.mxu0 %v945
        %1665 = vmatprep.subr.bf16.mxu0 %v942
        %1666 = vmatpush1.bf16.msra.mxu0 %v941
        %1667 = vmatprep.subr.bf16.mxu0 %v938
        %1668 = vmatpush1.bf16.msra.mxu0 %v937
        %1669 = vmatprep.subr.bf16.mxu0 %v934
        %1670 = vmatpush1.bf16.msra.mxu0 %v933
        %1671 = vmatprep.subr.bf16.mxu0 %v930
        %1672 = vmatpush1.bf16.msra.mxu0 %v929
        %1673 = vmatprep.subr.bf16.mxu0 %v926
        %1674 = vmatpush1.bf16.msra.mxu0 %v925
        %1675 = vmatprep.subr.bf16.mxu0 %v922
        %1676 = vmatpush1.bf16.msra.mxu0 %v921
        %1677 = vmatprep.subr.bf16.mxu0 %v918
        %1678 = vmatpush1.bf16.msra.mxu0 %v917
        %1679 = vmatprep.subr.bf16.mxu0 %v978
        %1680 = vmatpush2.bf16.msra.mxu0 %v977
        %1681 = vmatprep.subr.bf16.mxu0 %v974
        %1682 = vmatpush2.bf16.msra.mxu0 %v973
        %1683 = vmatprep.subr.bf16.mxu0 %v970
        %1684 = vmatpush2.bf16.msra.mxu0 %v969
        %1685 = vmatprep.subr.bf16.mxu0 %v966
        %1686 = vmatpush2.bf16.msra.mxu0 %v965
        %1687 = vmatprep.subr.bf16.mxu0 %v962
        %1688 = vmatpush2.bf16.msra.mxu0 %v961
        %1689 = vmatprep.subr.bf16.mxu0 %v958
        %1690 = vmatpush2.bf16.msra.mxu0 %v957
        %1691 = vmatprep.subr.bf16.mxu0 %v954
        %1692 = vmatpush2.bf16.msra.mxu0 %v953
        %1693 = vmatprep.subr.bf16.mxu0 %v950
        %1694 = vmatpush2.bf16.msra.mxu0 %v949
        %1695 = vmatprep.mubr.bf16.mxu0 %v396
        %1696 = vmatmul.mubr.bf16.gmra.mxu0 %v395
        %v1697 = vpop.f32.mrf.mxu0
        %v1698 = vadd.f32 %v1657, %v1697
        %v1699 = vpop.f32.mrf.mxu0
        %v1700 = vadd.f32 %v1659, %v1699
        %v1701 = vpop.f32.mrf.mxu0
        %v1702 = vpop.f32.mrf.mxu0
        %1703 = vdwg.mxu0
        %1704 = vmatprep.subr.bf16.mxu0 %v1010
        %1705 = vmatpush1.bf16.msra.mxu0 %v1009
        %1706 = vmatprep.subr.bf16.mxu0 %v1006
        %1707 = vmatpush1.bf16.msra.mxu0 %v1005
        %1708 = vmatprep.subr.bf16.mxu0 %v1002
        %1709 = vmatpush1.bf16.msra.mxu0 %v1001
        %1710 = vmatprep.subr.bf16.mxu0 %v998
        %1711 = vmatpush1.bf16.msra.mxu0 %v997
        %1712 = vmatprep.subr.bf16.mxu0 %v994
        %1713 = vmatpush1.bf16.msra.mxu0 %v993
        %1714 = vmatprep.subr.bf16.mxu0 %v990
        %1715 = vmatpush1.bf16.msra.mxu0 %v989
        %1716 = vmatprep.subr.bf16.mxu0 %v986
        %1717 = vmatpush1.bf16.msra.mxu0 %v985
        %1718 = vmatprep.subr.bf16.mxu0 %v982
        %1719 = vmatpush1.bf16.msra.mxu0 %v981
        %1720 = vmatprep.subr.bf16.mxu0 %v1042
        %1721 = vmatpush2.bf16.msra.mxu0 %v1041
        %1722 = vmatprep.subr.bf16.mxu0 %v1038
        %1723 = vmatpush2.bf16.msra.mxu0 %v1037
        %1724 = vmatprep.subr.bf16.mxu0 %v1034
        %1725 = vmatpush2.bf16.msra.mxu0 %v1033
        %1726 = vmatprep.subr.bf16.mxu0 %v1030
        %1727 = vmatpush2.bf16.msra.mxu0 %v1029
        %1728 = vmatprep.subr.bf16.mxu0 %v1026
        %1729 = vmatpush2.bf16.msra.mxu0 %v1025
        %1730 = vmatprep.subr.bf16.mxu0 %v1022
        %1731 = vmatpush2.bf16.msra.mxu0 %v1021
        %1732 = vmatprep.subr.bf16.mxu0 %v1018
        %1733 = vmatpush2.bf16.msra.mxu0 %v1017
        %1734 = vmatprep.subr.bf16.mxu0 %v1014
        %1735 = vmatpush2.bf16.msra.mxu0 %v1013
        %1736 = vmatprep.mubr.bf16.mxu0 %v398
        %1737 = vmatmul.mubr.bf16.gmra.mxu0 %v397
        %v1738 = vpop.f32.mrf.mxu0
        %v1739 = vadd.f32 %v1698, %v1738
        %v1740 = vpop.f32.mrf.mxu0
        %v1741 = vadd.f32 %v1700, %v1740
        %v1742 = vpop.f32.mrf.mxu0
        %v1743 = vpop.f32.mrf.mxu0
        %1744 = vdwg.mxu0
        %1745 = vmatprep.subr.bf16.mxu0 %v1074
        %1746 = vmatpush1.bf16.msra.mxu0 %v1073
        %1747 = vmatprep.subr.bf16.mxu0 %v1070
        %1748 = vmatpush1.bf16.msra.mxu0 %v1069
        %1749 = vmatprep.subr.bf16.mxu0 %v1066
        %1750 = vmatpush1.bf16.msra.mxu0 %v1065
        %1751 = vmatprep.subr.bf16.mxu0 %v1062
        %1752 = vmatpush1.bf16.msra.mxu0 %v1061
        %1753 = vmatprep.subr.bf16.mxu0 %v1058
        %1754 = vmatpush1.bf16.msra.mxu0 %v1057
        %1755 = vmatprep.subr.bf16.mxu0 %v1054
        %1756 = vmatpush1.bf16.msra.mxu0 %v1053
        %1757 = vmatprep.subr.bf16.mxu0 %v1050
        %1758 = vmatpush1.bf16.msra.mxu0 %v1049
        %1759 = vmatprep.subr.bf16.mxu0 %v1046
        %1760 = vmatpush1.bf16.msra.mxu0 %v1045
        %1761 = vmatprep.subr.bf16.mxu0 %v1106
        %1762 = vmatpush2.bf16.msra.mxu0 %v1105
        %1763 = vmatprep.subr.bf16.mxu0 %v1102
        %1764 = vmatpush2.bf16.msra.mxu0 %v1101
        %1765 = vmatprep.subr.bf16.mxu0 %v1098
        %1766 = vmatpush2.bf16.msra.mxu0 %v1097
        %1767 = vmatprep.subr.bf16.mxu0 %v1094
        %1768 = vmatpush2.bf16.msra.mxu0 %v1093
        %1769 = vmatprep.subr.bf16.mxu0 %v1090
        %1770 = vmatpush2.bf16.msra.mxu0 %v1089
        %1771 = vmatprep.subr.bf16.mxu0 %v1086
        %1772 = vmatpush2.bf16.msra.mxu0 %v1085
        %1773 = vmatprep.subr.bf16.mxu0 %v1082
        %1774 = vmatpush2.bf16.msra.mxu0 %v1081
        %1775 = vmatprep.subr.bf16.mxu0 %v1078
        %1776 = vmatpush2.bf16.msra.mxu0 %v1077
        %1777 = vmatprep.mubr.bf16.mxu0 %v400
        %1778 = vmatmul.mubr.bf16.gmra.mxu0 %v399
        %v1779 = vpop.f32.mrf.mxu0
        %v1780 = vadd.f32 %v1739, %v1779
        %v1781 = vpop.f32.mrf.mxu0
        %v1782 = vadd.f32 %v1741, %v1781
        %v1783 = vpop.f32.mrf.mxu0
        %v1784 = vpop.f32.mrf.mxu0
        %1785 = vdwg.mxu0
        %1786 = vmatprep.subr.bf16.mxu0 %v1138
        %1787 = vmatpush1.bf16.msra.mxu0 %v1137
        %1788 = vmatprep.subr.bf16.mxu0 %v1134
        %1789 = vmatpush1.bf16.msra.mxu0 %v1133
        %1790 = vmatprep.subr.bf16.mxu0 %v1130
        %1791 = vmatpush1.bf16.msra.mxu0 %v1129
        %1792 = vmatprep.subr.bf16.mxu0 %v1126
        %1793 = vmatpush1.bf16.msra.mxu0 %v1125
        %1794 = vmatprep.subr.bf16.mxu0 %v1122
        %1795 = vmatpush1.bf16.msra.mxu0 %v1121
        %1796 = vmatprep.subr.bf16.mxu0 %v1118
        %1797 = vmatpush1.bf16.msra.mxu0 %v1117
        %1798 = vmatprep.subr.bf16.mxu0 %v1114
        %1799 = vmatpush1.bf16.msra.mxu0 %v1113
        %1800 = vmatprep.subr.bf16.mxu0 %v1110
        %1801 = vmatpush1.bf16.msra.mxu0 %v1109
        %1802 = vmatprep.subr.bf16.mxu0 %v1170
        %1803 = vmatpush2.bf16.msra.mxu0 %v1169
        %1804 = vmatprep.subr.bf16.mxu0 %v1166
        %1805 = vmatpush2.bf16.msra.mxu0 %v1165
        %1806 = vmatprep.subr.bf16.mxu0 %v1162
        %1807 = vmatpush2.bf16.msra.mxu0 %v1161
        %1808 = vmatprep.subr.bf16.mxu0 %v1158
        %1809 = vmatpush2.bf16.msra.mxu0 %v1157
        %1810 = vmatprep.subr.bf16.mxu0 %v1154
        %1811 = vmatpush2.bf16.msra.mxu0 %v1153
        %1812 = vmatprep.subr.bf16.mxu0 %v1150
        %1813 = vmatpush2.bf16.msra.mxu0 %v1149
        %1814 = vmatprep.subr.bf16.mxu0 %v1146
        %1815 = vmatpush2.bf16.msra.mxu0 %v1145
        %1816 = vmatprep.subr.bf16.mxu0 %v1142
        %1817 = vmatpush2.bf16.msra.mxu0 %v1141
        %1818 = vmatprep.mubr.bf16.mxu0 %v402
        %1819 = vmatmul.mubr.bf16.gmra.mxu0 %v401
        %v1820 = vpop.f32.mrf.mxu0
        %v1821 = vadd.f32 %v1780, %v1820
        %v1822 = vpop.f32.mrf.mxu0
        %v1823 = vadd.f32 %v1782, %v1822
        %v1824 = vpop.f32.mrf.mxu0
        %v1825 = vpop.f32.mrf.mxu0
        %1826 = vdwg.mxu0
        %v1827 = vld [vmem:[%s303] sm:$0xf]
        %v1829 = vlaneseq
        %v1830 = vshrl.u32 %v1829, 7
        %v1831 = vsub.s32 0, %v1830
        %v1832 = vrot.slane %v1827, %v1831
        %v1833 = vlaneseq
        %v1834 = vshrl.u32 %v1833, 7
        %v1835 = vsub.s32 1, %v1834
        %v1836 = vrot.slane %v1827, %v1835
        %v1837 = vlaneseq
        %v1838 = vshrl.u32 %v1837, 7
        %v1839 = vsub.s32 2, %v1838
        %v1840 = vrot.slane %v1827, %v1839
        %v1841 = vlaneseq
        %v1842 = vshrl.u32 %v1841, 7
        %v1843 = vsub.s32 3, %v1842
        %v1844 = vrot.slane %v1827, %v1843
        %v1849 = vmul.f32 %v1493, %v1832
        %v1850 = vmul.f32 %v1495, %v1836
        %v1851 = vmul.f32 %v1821, %v1840
        %v1852 = vmul.f32 %v1823, %v1844
        %v1853 = vld [vmem:[%s312] sm:$0xf]
        %v1855 = vlaneseq
        %v1856 = vshrl.u32 %v1855, 7
        %v1857 = vsub.s32 0, %v1856
        %v1858 = vrot.slane %v1853, %v1857
        %v1859 = vlaneseq
        %v1860 = vshrl.u32 %v1859, 7
        %v1861 = vsub.s32 1, %v1860
        %v1862 = vrot.slane %v1853, %v1861
        %v1863 = vlaneseq
        %v1864 = vshrl.u32 %v1863, 7
        %v1865 = vsub.s32 2, %v1864
        %v1866 = vrot.slane %v1853, %v1865
        %v1867 = vlaneseq
        %v1868 = vshrl.u32 %v1867, 7
        %v1869 = vsub.s32 3, %v1868
        %v1870 = vrot.slane %v1853, %v1869
        %v1875 = vadd.f32 %v1849, %v1858
        %v1876 = vadd.f32 %v1850, %v1862
        %v1877 = vadd.f32 %v1851, %v1866
        %v1878 = vadd.f32 %v1852, %v1870
        %v1879 = vmax.f32 %v1875, 0.0
        %v1880 = vmax.f32 %v1876, 0.0
        %v1881 = vmax.f32 %v1877, 0.0
        %v1882 = vmax.f32 %v1878, 0.0
        %v1883 = vpack.c.bf16 %v1879, %v1879
        %v1884 = vpack.c.bf16 %v1880, %v1880
        %v1885 = vpack.c.bf16 %v1881, %v1881
        %v1886 = vpack.c.bf16 %v1882, %v1882
        %v1887 = vld [vmem:[%s321] sm:$0xf]
        %v1888 = vld [vmem:[%s321 + $0x4] sm:$0xf]
        %v1889 = vld [vmem:[%s321 + $0x8] sm:$0xf]
        %v1890 = vld [vmem:[%s321 + $0xc] sm:$0xf]
        %v1891 = vld [vmem:[%s321 + $0x10] sm:$0xf]
        %v1892 = vld [vmem:[%s321 + $0x14] sm:$0xf]
        %v1893 = vld [vmem:[%s321 + $0x18] sm:$0xf]
        %v1894 = vld [vmem:[%s321 + $0x1c] sm:$0xf]
        %v1895 = vld [vmem:[%s321 + $0x20] sm:$0xf]
        %v1896 = vld [vmem:[%s321 + $0x24] sm:$0xf]
        %v1897 = vld [vmem:[%s321 + $0x28] sm:$0xf]
        %v1898 = vld [vmem:[%s321 + $0x2c] sm:$0xf]
        %v1899 = vld [vmem:[%s321 + $0x30] sm:$0xf]
        %v1900 = vld [vmem:[%s321 + $0x34] sm:$0xf]
        %v1901 = vld [vmem:[%s321 + $0x38] sm:$0xf]
        %v1902 = vld [vmem:[%s321 + $0x3c] sm:$0xf]
        %v1903 = vld [vmem:[%s321 + $0x40] sm:$0xf]
        %v1904 = vld [vmem:[%s321 + $0x44] sm:$0xf]
        %v1905 = vld [vmem:[%s321 + $0x48] sm:$0xf]
        %v1906 = vld [vmem:[%s321 + $0x4c] sm:$0xf]
        %v1907 = vld [vmem:[%s321 + $0x50] sm:$0xf]
        %v1908 = vld [vmem:[%s321 + $0x54] sm:$0xf]
        %v1909 = vld [vmem:[%s321 + $0x58] sm:$0xf]
        %v1910 = vld [vmem:[%s321 + $0x5c] sm:$0xf]
        %v1911 = vld [vmem:[%s321 + $0x60] sm:$0xf]
        %v1912 = vld [vmem:[%s321 + $0x64] sm:$0xf]
        %v1913 = vld [vmem:[%s321 + $0x68] sm:$0xf]
        %v1914 = vld [vmem:[%s321 + $0x6c] sm:$0xf]
        %v1915 = vld [vmem:[%s321 + $0x70] sm:$0xf]
        %v1916 = vld [vmem:[%s321 + $0x74] sm:$0xf]
        %v1917 = vld [vmem:[%s321 + $0x78] sm:$0xf]
        %v1918 = vld [vmem:[%s321 + $0x7c] sm:$0xf]
        %v1919 = vld [vmem:[%s321 + $0x80] sm:$0xf]
        %v1920 = vld [vmem:[%s321 + $0x84] sm:$0xf]
        %v1921 = vld [vmem:[%s321 + $0x88] sm:$0xf]
        %v1922 = vld [vmem:[%s321 + $0x8c] sm:$0xf]
        %v1923 = vld [vmem:[%s321 + $0x90] sm:$0xf]
        %v1924 = vld [vmem:[%s321 + $0x94] sm:$0xf]
        %v1925 = vld [vmem:[%s321 + $0x98] sm:$0xf]
        %v1926 = vld [vmem:[%s321 + $0x9c] sm:$0xf]
        %v1927 = vld [vmem:[%s321 + $0xa0] sm:$0xf]
        %v1928 = vld [vmem:[%s321 + $0xa4] sm:$0xf]
        %v1929 = vld [vmem:[%s321 + $0xa8] sm:$0xf]
        %v1930 = vld [vmem:[%s321 + $0xac] sm:$0xf]
        %v1931 = vld [vmem:[%s321 + $0xb0] sm:$0xf]
        %v1932 = vld [vmem:[%s321 + $0xb4] sm:$0xf]
        %v1933 = vld [vmem:[%s321 + $0xb8] sm:$0xf]
        %v1934 = vld [vmem:[%s321 + $0xbc] sm:$0xf]
        %v1935 = vld [vmem:[%s321 + $0xc0] sm:$0xf]
        %v1936 = vld [vmem:[%s321 + $0xc4] sm:$0xf]
        %v1937 = vld [vmem:[%s321 + $0xc8] sm:$0xf]
        %v1938 = vld [vmem:[%s321 + $0xcc] sm:$0xf]
        %v1939 = vld [vmem:[%s321 + $0xd0] sm:$0xf]
        %v1940 = vld [vmem:[%s321 + $0xd4] sm:$0xf]
        %v1941 = vld [vmem:[%s321 + $0xd8] sm:$0xf]
        %v1942 = vld [vmem:[%s321 + $0xdc] sm:$0xf]
        %v1943 = vld [vmem:[%s321 + $0xe0] sm:$0xf]
        %v1944 = vld [vmem:[%s321 + $0xe4] sm:$0xf]
        %v1945 = vld [vmem:[%s321 + $0xe8] sm:$0xf]
        %v1946 = vld [vmem:[%s321 + $0xec] sm:$0xf]
        %v1947 = vld [vmem:[%s321 + $0xf0] sm:$0xf]
        %v1948 = vld [vmem:[%s321 + $0xf4] sm:$0xf]
        %v1949 = vld [vmem:[%s321 + $0xf8] sm:$0xf]
        %v1950 = vld [vmem:[%s321 + $0xfc] sm:$0xf]
        %v2015 = vunpack.c.l.b16 %v1887
        %v2016 = vunpack.c.l.b16 %v1888
        %v2017 = vunpack.c.l.b16 %v1889
        %v2018 = vunpack.c.l.b16 %v1890
        %v2019 = vunpack.c.l.b16 %v1891
        %v2020 = vunpack.c.l.b16 %v1892
        %v2021 = vunpack.c.l.b16 %v1893
        %v2022 = vunpack.c.l.b16 %v1894
        %v2023 = vunpack.c.l.b16 %v1895
        %v2024 = vunpack.c.l.b16 %v1896
        %v2025 = vunpack.c.l.b16 %v1897
        %v2026 = vunpack.c.l.b16 %v1898
        %v2027 = vunpack.c.l.b16 %v1899
        %v2028 = vunpack.c.l.b16 %v1900
        %v2029 = vunpack.c.l.b16 %v1901
        %v2030 = vunpack.c.l.b16 %v1902
        %v2031 = vunpack.c.l.b16 %v1903
        %v2032 = vunpack.c.l.b16 %v1904
        %v2033 = vunpack.c.l.b16 %v1905
        %v2034 = vunpack.c.l.b16 %v1906
        %v2035 = vunpack.c.l.b16 %v1907
        %v2036 = vunpack.c.l.b16 %v1908
        %v2037 = vunpack.c.l.b16 %v1909
        %v2038 = vunpack.c.l.b16 %v1910
        %v2039 = vunpack.c.l.b16 %v1911
        %v2040 = vunpack.c.l.b16 %v1912
        %v2041 = vunpack.c.l.b16 %v1913
        %v2042 = vunpack.c.l.b16 %v1914
        %v2043 = vunpack.c.l.b16 %v1915
        %v2044 = vunpack.c.l.b16 %v1916
        %v2045 = vunpack.c.l.b16 %v1917
        %v2046 = vunpack.c.l.b16 %v1918
        %v2047 = vunpack.c.l.b16 %v1919
        %v2048 = vunpack.c.l.b16 %v1920
        %v2049 = vunpack.c.l.b16 %v1921
        %v2050 = vunpack.c.l.b16 %v1922
        %v2051 = vunpack.c.l.b16 %v1923
        %v2052 = vunpack.c.l.b16 %v1924
        %v2053 = vunpack.c.l.b16 %v1925
        %v2054 = vunpack.c.l.b16 %v1926
        %v2055 = vunpack.c.l.b16 %v1927
        %v2056 = vunpack.c.l.b16 %v1928
        %v2057 = vunpack.c.l.b16 %v1929
        %v2058 = vunpack.c.l.b16 %v1930
        %v2059 = vunpack.c.l.b16 %v1931
        %v2060 = vunpack.c.l.b16 %v1932
        %v2061 = vunpack.c.l.b16 %v1933
        %v2062 = vunpack.c.l.b16 %v1934
        %v2063 = vunpack.c.l.b16 %v1935
        %v2064 = vunpack.c.l.b16 %v1936
        %v2065 = vunpack.c.l.b16 %v1937
        %v2066 = vunpack.c.l.b16 %v1938
        %v2067 = vunpack.c.l.b16 %v1939
        %v2068 = vunpack.c.l.b16 %v1940
        %v2069 = vunpack.c.l.b16 %v1941
        %v2070 = vunpack.c.l.b16 %v1942
        %v2071 = vunpack.c.l.b16 %v1943
        %v2072 = vunpack.c.l.b16 %v1944
        %v2073 = vunpack.c.l.b16 %v1945
        %v2074 = vunpack.c.l.b16 %v1946
        %v2075 = vunpack.c.l.b16 %v1947
        %v2076 = vunpack.c.l.b16 %v1948
        %v2077 = vunpack.c.l.b16 %v1949
        %v2078 = vunpack.c.l.b16 %v1950
        %v2079 = vpack.c.b16 %v2016, %v2015
        %v2080 = vpack.c.b16 %v2018, %v2017
        %v2081 = vpack.c.b16 %v2020, %v2019
        %v2082 = vpack.c.b16 %v2022, %v2021
        %v2083 = vpack.c.b16 %v2024, %v2023
        %v2084 = vpack.c.b16 %v2026, %v2025
        %v2085 = vpack.c.b16 %v2028, %v2027
        %v2086 = vpack.c.b16 %v2030, %v2029
        %v2087 = vpack.c.b16 %v2032, %v2031
        %v2088 = vpack.c.b16 %v2034, %v2033
        %v2089 = vpack.c.b16 %v2036, %v2035
        %v2090 = vpack.c.b16 %v2038, %v2037
        %v2091 = vpack.c.b16 %v2040, %v2039
        %v2092 = vpack.c.b16 %v2042, %v2041
        %v2093 = vpack.c.b16 %v2044, %v2043
        %v2094 = vpack.c.b16 %v2046, %v2045
        %v2095 = vpack.c.b16 %v2048, %v2047
        %v2096 = vpack.c.b16 %v2050, %v2049
        %v2097 = vpack.c.b16 %v2052, %v2051
        %v2098 = vpack.c.b16 %v2054, %v2053
        %v2099 = vpack.c.b16 %v2056, %v2055
        %v2100 = vpack.c.b16 %v2058, %v2057
        %v2101 = vpack.c.b16 %v2060, %v2059
        %v2102 = vpack.c.b16 %v2062, %v2061
        %v2103 = vpack.c.b16 %v2064, %v2063
        %v2104 = vpack.c.b16 %v2066, %v2065
        %v2105 = vpack.c.b16 %v2068, %v2067
        %v2106 = vpack.c.b16 %v2070, %v2069
        %v2107 = vpack.c.b16 %v2072, %v2071
        %v2108 = vpack.c.b16 %v2074, %v2073
        %v2109 = vpack.c.b16 %v2076, %v2075
        %v2110 = vpack.c.b16 %v2078, %v2077
        %2143 = vmatprep.subr.bf16.mxu0 0
        %2144 = vmatpush1.bf16.msra.mxu0 %v2086
        %2145 = vmatprep.subr.bf16.mxu0 0
        %2146 = vmatpush1.bf16.msra.mxu0 %v2085
        %2147 = vmatprep.subr.bf16.mxu0 0
        %2148 = vmatpush1.bf16.msra.mxu0 %v2084
        %2149 = vmatprep.subr.bf16.mxu0 0
        %2150 = vmatpush1.bf16.msra.mxu0 %v2083
        %2151 = vmatprep.subr.bf16.mxu0 0
        %2152 = vmatpush1.bf16.msra.mxu0 %v2082
        %2153 = vmatprep.subr.bf16.mxu0 0
        %2154 = vmatpush1.bf16.msra.mxu0 %v2081
        %2155 = vmatprep.subr.bf16.mxu0 0
        %2156 = vmatpush1.bf16.msra.mxu0 %v2080
        %2157 = vmatprep.subr.bf16.mxu0 0
        %2158 = vmatpush1.bf16.msra.mxu0 %v2079
        %2159 = vmatprep.subr.bf16.mxu0 0
        %2160 = vmatpush2.bf16.msra.mxu0 %v2094
        %2161 = vmatprep.subr.bf16.mxu0 0
        %2162 = vmatpush2.bf16.msra.mxu0 %v2093
        %2163 = vmatprep.subr.bf16.mxu0 0
        %2164 = vmatpush2.bf16.msra.mxu0 %v2092
        %2165 = vmatprep.subr.bf16.mxu0 0
        %2166 = vmatpush2.bf16.msra.mxu0 %v2091
        %2167 = vmatprep.subr.bf16.mxu0 0
        %2168 = vmatpush2.bf16.msra.mxu0 %v2090
        %2169 = vmatprep.subr.bf16.mxu0 0
        %2170 = vmatpush2.bf16.msra.mxu0 %v2089
        %2171 = vmatprep.subr.bf16.mxu0 0
        %2172 = vmatpush2.bf16.msra.mxu0 %v2088
        %2173 = vmatprep.subr.bf16.mxu0 0
        %2174 = vmatpush2.bf16.msra.mxu0 %v2087
        %2175 = vmatprep.mubr.bf16.mxu0 %v1884
        %2176 = vmatmul.mubr.bf16.gmra.mxu0 %v1883
        %v2177 = vpop.f32.mrf.mxu0
        %v2178 = vadd.f32 0.0, %v2177
        %v2179 = vpop.f32.mrf.mxu0
        %v2180 = vpop.f32.mrf.mxu0
        %v2181 = vpop.f32.mrf.mxu0
        %2182 = vdwg.mxu0
        %2183 = vmatprep.subr.bf16.mxu0 0
        %2184 = vmatpush1.bf16.msra.mxu0 %v2102
        %2185 = vmatprep.subr.bf16.mxu0 0
        %2186 = vmatpush1.bf16.msra.mxu0 %v2101
        %2187 = vmatprep.subr.bf16.mxu0 0
        %2188 = vmatpush1.bf16.msra.mxu0 %v2100
        %2189 = vmatprep.subr.bf16.mxu0 0
        %2190 = vmatpush1.bf16.msra.mxu0 %v2099
        %2191 = vmatprep.subr.bf16.mxu0 0
        %2192 = vmatpush1.bf16.msra.mxu0 %v2098
        %2193 = vmatprep.subr.bf16.mxu0 0
        %2194 = vmatpush1.bf16.msra.mxu0 %v2097
        %2195 = vmatprep.subr.bf16.mxu0 0
        %2196 = vmatpush1.bf16.msra.mxu0 %v2096
        %2197 = vmatprep.subr.bf16.mxu0 0
        %2198 = vmatpush1.bf16.msra.mxu0 %v2095
        %2199 = vmatprep.subr.bf16.mxu0 0
        %2200 = vmatpush2.bf16.msra.mxu0 %v2110
        %2201 = vmatprep.subr.bf16.mxu0 0
        %2202 = vmatpush2.bf16.msra.mxu0 %v2109
        %2203 = vmatprep.subr.bf16.mxu0 0
        %2204 = vmatpush2.bf16.msra.mxu0 %v2108
        %2205 = vmatprep.subr.bf16.mxu0 0
        %2206 = vmatpush2.bf16.msra.mxu0 %v2107
        %2207 = vmatprep.subr.bf16.mxu0 0
        %2208 = vmatpush2.bf16.msra.mxu0 %v2106
        %2209 = vmatprep.subr.bf16.mxu0 0
        %2210 = vmatpush2.bf16.msra.mxu0 %v2105
        %2211 = vmatprep.subr.bf16.mxu0 0
        %2212 = vmatpush2.bf16.msra.mxu0 %v2104
        %2213 = vmatprep.subr.bf16.mxu0 0
        %2214 = vmatpush2.bf16.msra.mxu0 %v2103
        %2215 = vmatprep.mubr.bf16.mxu0 %v1886
        %2216 = vmatmul.mubr.bf16.gmra.mxu0 %v1885
        %v2217 = vpop.f32.mrf.mxu0
        %v2218 = vadd.f32 %v2178, %v2217
        %v2219 = vpop.f32.mrf.mxu0
        %v2220 = vpop.f32.mrf.mxu0
        %v2221 = vpop.f32.mrf.mxu0
        %2222 = vdwg.mxu0
        %2223 = vst [vmem:[%s369] sm:$0xff] %v2218
        %p2224 = scmp.lt.s32.totalorder %s23, 1
        %s2225 = scalar_select %p2224, %s23, 1
        %s2226 = smul.addr %s2225, 8
        %s2227 = scalar_lea.vmem %s5, %s2226
        // Predicated region
        $region61: #{posenet_forward.1} parent=39 // pred_check
          %p2228 = pneg %p166
        $region62: #{posenet_forward.1} parent=39 // pred_check_branch
          %2230 = sbr.rel (%p2228) target = $region64
        $region63: #{posenet_forward.1} parent=39 // pred_region
          _
        $region64: #{posenet_forward.1} parent=39 // pred_fallthru
          _
      $region40: #{posenet_forward.1} parent=5 // pred_fallthru
        _
      %p2231 = scmp.le.s32.totalorder 2, %s18
      // Predicated region
      $region65: #{posenet_forward.1} parent=5 // pred_check
        %p2232 = pneg %p2231
      $region66: #{posenet_forward.1} parent=5 // pred_check_branch
        %2234 = sbr.rel (%p2232) target = $region68
      $region67: #{posenet_forward.1} parent=5 // pred_region
        %s2235 = ssub.s32 %s18, 2
        // Predicated region
        $region69: #{posenet_forward.1} parent=67 // pred_check
          %p2236 = pneg %p172
        $region70: #{posenet_forward.1} parent=67 // pred_check_branch
          %2238 = sbr.rel (%p2236) target = $region72
        $region71: #{posenet_forward.1} parent=67 // pred_region
          %p2239 = scmp.lt.s32.totalorder %s24, 1
          %s2240 = scalar_select %p2239, %s24, 1
          %s2241 = smul.addr %s2240, 8
          %s2242 = scalar_lea.vmem %s5, %s2241
        $region72: #{posenet_forward.1} parent=67 // pred_fallthru
          _
      $region68: #{posenet_forward.1} parent=5 // pred_fallthru
        _
    $region6: #{posenet_forward.1} parent=1 // loop_footer
      %s22 = sadd.s32 1, %s18
    $region7: #{posenet_forward.1} parent=1 // loop_footer_branch
      %17 = sbr.rel target = $region3
    $region8: #{posenet_forward.1} parent=1 // loop_exit
      _
    %2243 = vsyncpa [#allocation3], 1
    %s2244 = scalar_lea.sflag [#allocation3], 1
    %2245 = vsyncpa %s2244, 1
    %2246 = vsyncpa [#allocation5], 1
    %s2247 = scalar_lea.sflag [#allocation5], 1
    %2248 = vsyncpa %s2247, 1
    %2249 = vsyncpa [#allocation8], 1
    %s2250 = scalar_lea.sflag [#allocation8], 1
    %2251 = vsyncpa %s2250, 1

</llo_original>
